<compile_context>
chip_gen: v5e
topology: v5e:2x2
jax: 0.10.0
libtpu: 0.0.40
codegen_flags: <defaults>
</compile_context>

<pallas_src>
import functools

import jax
import jax.numpy as jnp
from jax.experimental import pallas as pl
from jax.experimental.pallas import tpu as pltpu


def _round_up(a: int, b: int) -> int:
    return ((a + b - 1) // b) * b


def _mlp_kernel(*refs, num_layers: int):
    """Fused MLP body.  refs = (x, w0, b0, w1, b1, ..., w_{L-1}, b_{L-1}, out)."""
    x_ref = refs[0]
    o_ref = refs[1 + 2 * num_layers]

    h = x_ref[...]                                   # (tm, dim_in), compute dtype
    for l in range(num_layers):
        w_ref = refs[1 + 2 * l]                      # (fan_in, fan_out), compute dtype
        b_ref = refs[2 + 2 * l]                      # (1, fan_out), f32
        # MXU matmul with f32 accumulation.
        y = jnp.dot(h, w_ref[...], preferred_element_type=jnp.float32)
        y = y + b_ref[...]                           # bias / ReLU epilogue in f32
        if l != num_layers - 1:
            y = jnp.maximum(y, 0.0)
            h = y.astype(w_ref.dtype)                # back to compute dtype for next matmul
        else:
            o_ref[...] = y.astype(o_ref.dtype)       # only final result leaves VMEM


def mlp_forward(x, params, *, compute_dtype=jnp.bfloat16, tile_m=1024):
    """Fused MLP forward.  x: (M, dim_in) f32; params: [(W (in,out), b (out,))]."""
    M, dim_in = x.shape
    num_layers = len(params)
    dim_out = params[-1][0].shape[1]
    out_dtype = x.dtype

    assert tile_m % 8 == 0, "tile_m must be sublane-aligned"

    if M >= 16:
        # Keep the points grid at >= 2 steps so v7x's two TensorCores both get
        # work, but never exceed tile_m rows per step.
        tm = min(tile_m, _round_up(-(-M // 2), 8))
    else:
        # Tiny batch: block equals full array dim (exempt from (8,128) rule).
        tm = M
    m_pad = _round_up(M, tm)

    xp = x if m_pad == M else jnp.pad(x, ((0, m_pad - M), (0, 0)))
    xp = xp.astype(compute_dtype)

    inputs = [xp]
    in_specs = [pl.BlockSpec((tm, dim_in), lambda i: (i, 0))]
    # Grid-invariant weights/biases: whole-array VMEM residents, no pipelining.
    full_vmem = pl.BlockSpec(memory_space=pltpu.MemorySpace.VMEM)
    for w, b in params:
        inputs.append(w.astype(compute_dtype))
        inputs.append(b.astype(jnp.float32).reshape(1, -1))
        in_specs.append(full_vmem)
        in_specs.append(full_vmem)

    kernel = functools.partial(_mlp_kernel, num_layers=num_layers)

    out = pl.pallas_call(
        kernel,
        out_shape=jax.ShapeDtypeStruct((m_pad, dim_out), out_dtype),
        grid=(m_pad // tm,),
        in_specs=in_specs,
        out_specs=pl.BlockSpec((tm, dim_out), lambda i: (i, 0)),
        compiler_params=pltpu.CompilerParams(
            dimension_semantics=("parallel",),
        ),
    )(*inputs)
    return out if m_pad == M else out[:M]


def init_mlp_params(key, dim_in, dim_out, dim_hidden, num_layers):
    """Deterministic synthetic init matching nn.Linear shapes (stored transposed)."""
    params = []
    for l in range(num_layers):
        fan_in = dim_in if l == 0 else dim_hidden
        fan_out = dim_out if l == num_layers - 1 else dim_hidden
        key, kw, kb = jax.random.split(key, 3)
        bound = 1.0 / jnp.sqrt(float(fan_in))
        # stored as (fan_in, fan_out) == W^T of PyTorch's (fan_out, fan_in)
        w = jax.random.uniform(kw, (fan_in, fan_out), jnp.float32, -bound, bound)
        b = jax.random.uniform(kb, (fan_out,), jnp.float32, -bound, bound)
        params.append((w, b))
    return params


def mlp_forward_ref(x, params):
    num_layers = len(params)
    for l, (w, b) in enumerate(params):
        x = x @ w + b
        if l != num_layers - 1:
            x = jnp.maximum(x, 0.0)
    return x


if __name__ == "__main__":
    # Shapes consistent with the NeRF MLP usage (points x features).
    dim_in, dim_out, dim_hidden, num_layers = 8, 4, 32, 3
    n_points = 4096  # small; gives a 4-step grid at tile_m=1024

    key = jax.random.PRNGKey(0)
    key, kx = jax.random.split(key)
    x = jax.random.normal(kx, (n_points, dim_in), jnp.float32)
    params = init_mlp_params(key, dim_in, dim_out, dim_hidden, num_layers)

    ref = mlp_forward_ref(x, params)

    # 1) Exact-semantics f32 path (matches the PyTorch module's math).
    out_f32 = jax.block_until_ready(mlp_forward(x, params, compute_dtype=jnp.float32))
    assert out_f32.shape == (n_points, dim_out)
    assert jnp.allclose(out_f32, ref, atol=1e-5, rtol=1e-5), "f32 mismatch vs reference"

    # 2) bf16-matmul / f32-accumulate fast path (halved HBM traffic).
    out_bf16 = jax.block_until_ready(mlp_forward(x, params, compute_dtype=jnp.bfloat16))
    assert out_bf16.shape == (n_points, dim_out)
    assert jnp.allclose(out_bf16, ref, atol=5e-2, rtol=5e-2), "bf16 mismatch vs reference"

    # 3) Non-divisible small batch exercises the padding + tile-shrink path.
    x_small = x[:200]
    out_small = jax.block_until_ready(
        mlp_forward(x_small, params, compute_dtype=jnp.float32))
    assert out_small.shape == (200, dim_out)
    assert jnp.allclose(out_small, ref[:200], atol=1e-5, rtol=1e-5), "padded-batch mismatch"

    print("KERNEL_OK")
</pallas_src>

<mosaic_0001>
module attributes {stable_mosaic.version = 11 : i64} {
  func.func @_mlp_kernel(%arg0: i32, %arg1: memref<1024x8xf32, #tpu.memory_space<vmem>>, %arg2: memref<8x32xf32, #tpu.memory_space<vmem>>, %arg3: memref<1x32xf32, #tpu.memory_space<vmem>>, %arg4: memref<32x32xf32, #tpu.memory_space<vmem>>, %arg5: memref<1x32xf32, #tpu.memory_space<vmem>>, %arg6: memref<32x4xf32, #tpu.memory_space<vmem>>, %arg7: memref<1x4xf32, #tpu.memory_space<vmem>>, %arg8: memref<1024x4xf32, #tpu.memory_space<vmem>>) attributes {dimension_semantics = [#tpu.dimension_semantics<parallel>], iteration_bounds = array<i64: 4>, scalar_prefetch = 0 : i64, scratch_operands = 0 : i64, tpu.core_type = #tpu.core_type<tc>, window_params = [{transform_indices = @transform_0, window_bounds = array<i64: 1024, 8>}, {pipeline_mode = #tpu.pipeline_mode<synchronous>, transform_indices = @transform_1, window_bounds = array<i64: 8, 32>}, {pipeline_mode = #tpu.pipeline_mode<synchronous>, transform_indices = @transform_2, window_bounds = array<i64: 1, 32>}, {pipeline_mode = #tpu.pipeline_mode<synchronous>, transform_indices = @transform_3, window_bounds = array<i64: 32, 32>}, {pipeline_mode = #tpu.pipeline_mode<synchronous>, transform_indices = @transform_4, window_bounds = array<i64: 1, 32>}, {pipeline_mode = #tpu.pipeline_mode<synchronous>, transform_indices = @transform_5, window_bounds = array<i64: 32, 4>}, {pipeline_mode = #tpu.pipeline_mode<synchronous>, transform_indices = @transform_6, window_bounds = array<i64: 1, 4>}, {transform_indices = @transform_7, window_bounds = array<i64: 1024, 4>}]} {
    %c0 = arith.constant 0 : index
    %c0_0 = arith.constant 0 : index
    %0 = vector.load %arg1[%c0, %c0_0] : memref<1024x8xf32, #tpu.memory_space<vmem>>, vector<1024x8xf32>
    %c0_1 = arith.constant 0 : index
    %c0_2 = arith.constant 0 : index
    %1 = vector.load %arg2[%c0_1, %c0_2] : memref<8x32xf32, #tpu.memory_space<vmem>>, vector<8x32xf32>
    %cst = arith.constant dense<0.000000e+00> : vector<1024x32xf32>
    %2 = tpu.matmul %0, %1, %cst {dimension_numbers = #tpu.dot_dimension_numbers<[1], [0], [0], [1], [0, 0, 1, 1], [], []>} : vector<1024x8xf32>, vector<8x32xf32>, vector<1024x32xf32> -> vector<1024x32xf32>
    %c0_3 = arith.constant 0 : index
    %c0_4 = arith.constant 0 : index
    %3 = vector.load %arg3[%c0_3, %c0_4] : memref<1x32xf32, #tpu.memory_space<vmem>>, vector<1x32xf32>
    %4 = vector.broadcast %3 : vector<1x32xf32> to vector<1024x32xf32>
    %5 = arith.addf %2, %4 : vector<1024x32xf32>
    %cst_5 = arith.constant 0.000000e+00 : f32
    %6 = vector.broadcast %cst_5 : f32 to vector<1024x32xf32>
    %7 = arith.maximumf %5, %6 : vector<1024x32xf32>
    %c0_6 = arith.constant 0 : index
    %c0_7 = arith.constant 0 : index
    %8 = vector.load %arg4[%c0_6, %c0_7] : memref<32x32xf32, #tpu.memory_space<vmem>>, vector<32x32xf32>
    %cst_8 = arith.constant dense<0.000000e+00> : vector<1024x32xf32>
    %9 = tpu.matmul %7, %8, %cst_8 {dimension_numbers = #tpu.dot_dimension_numbers<[1], [0], [0], [1], [0, 0, 1, 1], [], []>} : vector<1024x32xf32>, vector<32x32xf32>, vector<1024x32xf32> -> vector<1024x32xf32>
    %c0_9 = arith.constant 0 : index
    %c0_10 = arith.constant 0 : index
    %10 = vector.load %arg5[%c0_9, %c0_10] : memref<1x32xf32, #tpu.memory_space<vmem>>, vector<1x32xf32>
    %11 = vector.broadcast %10 : vector<1x32xf32> to vector<1024x32xf32>
    %12 = arith.addf %9, %11 : vector<1024x32xf32>
    %cst_11 = arith.constant 0.000000e+00 : f32
    %13 = vector.broadcast %cst_11 : f32 to vector<1024x32xf32>
    %14 = arith.maximumf %12, %13 : vector<1024x32xf32>
    %c0_12 = arith.constant 0 : index
    %c0_13 = arith.constant 0 : index
    %15 = vector.load %arg6[%c0_12, %c0_13] : memref<32x4xf32, #tpu.memory_space<vmem>>, vector<32x4xf32>
    %cst_14 = arith.constant dense<0.000000e+00> : vector<1024x4xf32>
    %16 = tpu.matmul %14, %15, %cst_14 {dimension_numbers = #tpu.dot_dimension_numbers<[1], [0], [0], [1], [0, 0, 1, 1], [], []>} : vector<1024x32xf32>, vector<32x4xf32>, vector<1024x4xf32> -> vector<1024x4xf32>
    %c0_15 = arith.constant 0 : index
    %c0_16 = arith.constant 0 : index
    %17 = vector.load %arg7[%c0_15, %c0_16] : memref<1x4xf32, #tpu.memory_space<vmem>>, vector<1x4xf32>
    %18 = vector.broadcast %17 : vector<1x4xf32> to vector<1024x4xf32>
    %19 = arith.addf %16, %18 : vector<1024x4xf32>
    %c0_17 = arith.constant 0 : index
    %c0_18 = arith.constant 0 : index
    %20 = vector.load %arg8[%c0_17, %c0_18] : memref<1024x4xf32, #tpu.memory_space<vmem>>, vector<1024x4xf32>
    tpu.vector_store %arg8[%c0_17, %c0_18], %19 {strides = array<i32>} : memref<1024x4xf32, #tpu.memory_space<vmem>>, vector<1024x4xf32>,
    return
  }
  func.func @transform_0(%arg0: i32) -> (i32, i32) {
    %c0_i32 = arith.constant 0 : i32
    %c0_i32_0 = arith.constant 0 : i32
    return %arg0, %c0_i32 : i32, i32
  }
  func.func @transform_1(%arg0: i32) -> (i32, i32) {
    %c0_i32 = arith.constant 0 : i32
    %c0_i32_0 = arith.constant 0 : i32
    %c0_i32_1 = arith.constant 0 : i32
    return %c0_i32, %c0_i32_0 : i32, i32
  }
  func.func @transform_2(%arg0: i32) -> (i32, i32) {
    %c0_i32 = arith.constant 0 : i32
    %c0_i32_0 = arith.constant 0 : i32
    %c0_i32_1 = arith.constant 0 : i32
    return %c0_i32, %c0_i32_0 : i32, i32
  }
  func.func @transform_3(%arg0: i32) -> (i32, i32) {
    %c0_i32 = arith.constant 0 : i32
    %c0_i32_0 = arith.constant 0 : i32
    %c0_i32_1 = arith.constant 0 : i32
    return %c0_i32, %c0_i32_0 : i32, i32
  }
  func.func @transform_4(%arg0: i32) -> (i32, i32) {
    %c0_i32 = arith.constant 0 : i32
    %c0_i32_0 = arith.constant 0 : i32
    %c0_i32_1 = arith.constant 0 : i32
    return %c0_i32, %c0_i32_0 : i32, i32
  }
  func.func @transform_5(%arg0: i32) -> (i32, i32) {
    %c0_i32 = arith.constant 0 : i32
    %c0_i32_0 = arith.constant 0 : i32
    %c0_i32_1 = arith.constant 0 : i32
    return %c0_i32, %c0_i32_0 : i32, i32
  }
  func.func @transform_6(%arg0: i32) -> (i32, i32) {
    %c0_i32 = arith.constant 0 : i32
    %c0_i32_0 = arith.constant 0 : i32
    %c0_i32_1 = arith.constant 0 : i32
    return %c0_i32, %c0_i32_0 : i32, i32
  }
  func.func @transform_7(%arg0: i32) -> (i32, i32) {
    %c0_i32 = arith.constant 0 : i32
    %c0_i32_0 = arith.constant 0 : i32
    return %arg0, %c0_i32 : i32, i32
  }
}

</mosaic_0001>

<llo_original>
// kernel: tpu_custom_call.1
$region0: #{tpu_custom_call.1}
  #allocation0 [shape = 'u32[]', space=smem, size = 0x4, offset = 0x4, fixed_abs, tag = 'smem constant byte address 0x4 - core index']
  #allocation1 [shape = 'u32[72,128]{1,0:T(1,128)}', space=vmem, size = 0x9000, scoped, tag = 'internal scratch']
  %s0 = inlined_call_operand.vmem [shape: f32[4096,8], index: 0, kind: input, shape index: {}]
  %s1 = inlined_call_operand.vmem [shape: f32[8,32], index: 1, kind: input, shape index: {}]
  %s2 = inlined_call_operand.vmem [shape: f32[1,32], index: 2, kind: input, shape index: {}]
  %s3 = inlined_call_operand.vmem [shape: f32[32,32], index: 3, kind: input, shape index: {}]
  %s4 = inlined_call_operand.vmem [shape: f32[1,32], index: 4, kind: input, shape index: {}]
  %s5 = inlined_call_operand.vmem [shape: f32[32,4], index: 5, kind: input, shape index: {}]
  %s6 = inlined_call_operand.vmem [shape: f32[1,4], index: 6, kind: input, shape index: {}]
  %s7 = inlined_call_operand.vmem [shape: f32[4096,4], index: 7, kind: output, shape index: {}]
  %s8 = sld [smem:[#allocation0]]
  $region61: #{tpu_custom_call.1} parent=0
    _
  %s10 = ssub.s32 1, %s8
  %s11 = scalar_select 0, %s10, %s8
  loop: start=0, step=1, limit=6
  $region2: #{tpu_custom_call.1} parent=0 // loop_pre_header
    _
  $region3: #{tpu_custom_call.1} parent=0 // loop_header
    %s13 = sphi 0, %s17
    %p14 = scmp.ge.s32.totalorder %s13, 6
    %s23 = sphi 0, %s25
    %s26 = sphi 0, %s23
    %s27 = sphi 0, %s26
    %s43 = sphi 0, %s27
    %s47 = sphi 0, %s47
    %s49 = sphi 0, %s47
    %s50 = sphi 0, %s49
    %s64 = sphi 0, %s50
    %s68 = sphi 0, %s68
    %s70 = sphi 0, %s68
    %s71 = sphi 0, %s70
    %s85 = sphi 0, %s71
    %s89 = sphi 0, %s89
    %s91 = sphi 0, %s89
    %s92 = sphi 0, %s91
    %s106 = sphi 0, %s92
    %s110 = sphi 0, %s110
    %s112 = sphi 0, %s110
    %s113 = sphi 0, %s112
    %s127 = sphi 0, %s113
    %s131 = sphi 0, %s131
    %s133 = sphi 0, %s131
    %s134 = sphi 0, %s133
    %s148 = sphi 0, %s134
    %s152 = sphi 0, %s152
    %s154 = sphi 0, %s152
    %s155 = sphi 0, %s154
    %s169 = sphi 0, %s155
    %s175 = sphi 0, %s177
    %s178 = sphi 0, %s175
    %s179 = sphi 0, %s178
    %s195 = sphi 0, %s179
  $region4: #{tpu_custom_call.1} parent=0 // loop_header_branch
    %16 = sbr.rel (%p14) target = $region8
  $region5: #{tpu_custom_call.1} parent=0 // loop_body
    %s18 = ssub.s32 %s13, 1
    %s19 = ssub.s32 %s13, 2
    %s20 = sadd.s32 %s13, 1
    %s21 = ssub.s32 %s13, %s20
    %p22 = scmp.eq.s32.totalorder %s21, 0
    %s24 = sadd.s32 %s23, 1
    %s25 = scalar_select %p22, %s23, %s24
    %p28 = pneg %p22
    %p29 = scmp.eq.s32.totalorder %s13, 3
    %p30 = por %p28, %p29
    %p31 = scmp.ne.s32.totalorder %s23, %s26
    %p32 = scmp.eq.s32.totalorder %s13, 0
    %p33 = por %p31, %p32
    %p34 = scmp.ne.s32.totalorder %s23, %s26
    %p35 = scmp.eq.s32.totalorder %s18, 3
    %p36 = por %p34, %p35
    %p37 = scmp.ne.s32.totalorder %s26, %s27
    %p38 = scmp.eq.s32.totalorder %s18, 0
    %p39 = por %p37, %p38
    %p40 = scmp.ne.s32.totalorder %s26, %s27
    %p41 = scmp.eq.s32.totalorder %s19, 3
    %p42 = por %p40, %p41
    %p44 = scmp.ne.s32.totalorder %s27, %s43
    %p45 = scmp.eq.s32.totalorder %s19, 0
    %p46 = por %p44, %p45
    %s48 = sadd.s32 %s47, 1
    %p51 = scmp.eq.s32.totalorder %s13, 3
    %p52 = scmp.ne.s32.totalorder %s47, %s49
    %p53 = scmp.eq.s32.totalorder %s13, 0
    %p54 = por %p52, %p53
    %p55 = scmp.ne.s32.totalorder %s47, %s49
    %p56 = scmp.eq.s32.totalorder %s18, 3
    %p57 = por %p55, %p56
    %p58 = scmp.ne.s32.totalorder %s49, %s50
    %p59 = scmp.eq.s32.totalorder %s18, 0
    %p60 = por %p58, %p59
    %p61 = scmp.ne.s32.totalorder %s49, %s50
    %p62 = scmp.eq.s32.totalorder %s19, 3
    %p63 = por %p61, %p62
    %p65 = scmp.ne.s32.totalorder %s50, %s64
    %p66 = scmp.eq.s32.totalorder %s19, 0
    %p67 = por %p65, %p66
    %s69 = sadd.s32 %s68, 1
    %p72 = scmp.eq.s32.totalorder %s13, 3
    %p73 = scmp.ne.s32.totalorder %s68, %s70
    %p74 = scmp.eq.s32.totalorder %s13, 0
    %p75 = por %p73, %p74
    %p76 = scmp.ne.s32.totalorder %s68, %s70
    %p77 = scmp.eq.s32.totalorder %s18, 3
    %p78 = por %p76, %p77
    %p79 = scmp.ne.s32.totalorder %s70, %s71
    %p80 = scmp.eq.s32.totalorder %s18, 0
    %p81 = por %p79, %p80
    %p82 = scmp.ne.s32.totalorder %s70, %s71
    %p83 = scmp.eq.s32.totalorder %s19, 3
    %p84 = por %p82, %p83
    %p86 = scmp.ne.s32.totalorder %s71, %s85
    %p87 = scmp.eq.s32.totalorder %s19, 0
    %p88 = por %p86, %p87
    %s90 = sadd.s32 %s89, 1
    %p93 = scmp.eq.s32.totalorder %s13, 3
    %p94 = scmp.ne.s32.totalorder %s89, %s91
    %p95 = scmp.eq.s32.totalorder %s13, 0
    %p96 = por %p94, %p95
    %p97 = scmp.ne.s32.totalorder %s89, %s91
    %p98 = scmp.eq.s32.totalorder %s18, 3
    %p99 = por %p97, %p98
    %p100 = scmp.ne.s32.totalorder %s91, %s92
    %p101 = scmp.eq.s32.totalorder %s18, 0
    %p102 = por %p100, %p101
    %p103 = scmp.ne.s32.totalorder %s91, %s92
    %p104 = scmp.eq.s32.totalorder %s19, 3
    %p105 = por %p103, %p104
    %p107 = scmp.ne.s32.totalorder %s92, %s106
    %p108 = scmp.eq.s32.totalorder %s19, 0
    %p109 = por %p107, %p108
    %s111 = sadd.s32 %s110, 1
    %p114 = scmp.eq.s32.totalorder %s13, 3
    %p115 = scmp.ne.s32.totalorder %s110, %s112
    %p116 = scmp.eq.s32.totalorder %s13, 0
    %p117 = por %p115, %p116
    %p118 = scmp.ne.s32.totalorder %s110, %s112
    %p119 = scmp.eq.s32.totalorder %s18, 3
    %p120 = por %p118, %p119
    %p121 = scmp.ne.s32.totalorder %s112, %s113
    %p122 = scmp.eq.s32.totalorder %s18, 0
    %p123 = por %p121, %p122
    %p124 = scmp.ne.s32.totalorder %s112, %s113
    %p125 = scmp.eq.s32.totalorder %s19, 3
    %p126 = por %p124, %p125
    %p128 = scmp.ne.s32.totalorder %s113, %s127
    %p129 = scmp.eq.s32.totalorder %s19, 0
    %p130 = por %p128, %p129
    %s132 = sadd.s32 %s131, 1
    %p135 = scmp.eq.s32.totalorder %s13, 3
    %p136 = scmp.ne.s32.totalorder %s131, %s133
    %p137 = scmp.eq.s32.totalorder %s13, 0
    %p138 = por %p136, %p137
    %p139 = scmp.ne.s32.totalorder %s131, %s133
    %p140 = scmp.eq.s32.totalorder %s18, 3
    %p141 = por %p139, %p140
    %p142 = scmp.ne.s32.totalorder %s133, %s134
    %p143 = scmp.eq.s32.totalorder %s18, 0
    %p144 = por %p142, %p143
    %p145 = scmp.ne.s32.totalorder %s133, %s134
    %p146 = scmp.eq.s32.totalorder %s19, 3
    %p147 = por %p145, %p146
    %p149 = scmp.ne.s32.totalorder %s134, %s148
    %p150 = scmp.eq.s32.totalorder %s19, 0
    %p151 = por %p149, %p150
    %s153 = sadd.s32 %s152, 1
    %p156 = scmp.eq.s32.totalorder %s13, 3
    %p157 = scmp.ne.s32.totalorder %s152, %s154
    %p158 = scmp.eq.s32.totalorder %s13, 0
    %p159 = por %p157, %p158
    %p160 = scmp.ne.s32.totalorder %s152, %s154
    %p161 = scmp.eq.s32.totalorder %s18, 3
    %p162 = por %p160, %p161
    %p163 = scmp.ne.s32.totalorder %s154, %s155
    %p164 = scmp.eq.s32.totalorder %s18, 0
    %p165 = por %p163, %p164
    %p166 = scmp.ne.s32.totalorder %s154, %s155
    %p167 = scmp.eq.s32.totalorder %s19, 3
    %p168 = por %p166, %p167
    %p170 = scmp.ne.s32.totalorder %s155, %s169
    %p171 = scmp.eq.s32.totalorder %s19, 0
    %p172 = por %p170, %p171
    %s173 = ssub.s32 %s13, %s20
    %p174 = scmp.eq.s32.totalorder %s173, 0
    %s176 = sadd.s32 %s175, 1
    %s177 = scalar_select %p174, %s175, %s176
    %p180 = pneg %p174
    %p181 = scmp.eq.s32.totalorder %s13, 3
    %p182 = por %p180, %p181
    %p183 = scmp.ne.s32.totalorder %s175, %s178
    %p184 = scmp.eq.s32.totalorder %s13, 0
    %p185 = por %p183, %p184
    %p186 = scmp.ne.s32.totalorder %s175, %s178
    %p187 = scmp.eq.s32.totalorder %s18, 3
    %p188 = por %p186, %p187
    %p189 = scmp.ne.s32.totalorder %s178, %s179
    %p190 = scmp.eq.s32.totalorder %s18, 0
    %p191 = por %p189, %p190
    %p192 = scmp.ne.s32.totalorder %s178, %s179
    %p193 = scmp.eq.s32.totalorder %s19, 3
    %p194 = por %p192, %p193
    %p196 = scmp.ne.s32.totalorder %s179, %s195
    %p197 = scmp.eq.s32.totalorder %s19, 0
    %p198 = por %p196, %p197
    %p199 = scmp.le.s32.totalorder 1, %s13
    %p200 = scmp.lt.s32.totalorder %s13, 5
    %p201 = pnand %p199, %p200
    %p202 = pneg %p201
    // Predicated region
    $region9: #{tpu_custom_call.1} parent=5 // pred_check
      _
    $region10: #{tpu_custom_call.1} parent=5 // pred_check_branch
      %204 = sbr.rel (%p201) target = $region12
    $region11: #{tpu_custom_call.1} parent=5 // pred_region
      %s205 = ssub.s32 %s13, 1
      // Predicated region
      $region13: #{tpu_custom_call.1} parent=11 // pred_check
        %p206 = pneg %p60
      $region14: #{tpu_custom_call.1} parent=11 // pred_check_branch
        %208 = sbr.rel (%p206) target = $region16
      $region15: #{tpu_custom_call.1} parent=11 // pred_region
        _
      $region16: #{tpu_custom_call.1} parent=11 // pred_fallthru
        _
      // Predicated region
      $region17: #{tpu_custom_call.1} parent=11 // pred_check
        %p209 = pneg %p81
      $region18: #{tpu_custom_call.1} parent=11 // pred_check_branch
        %211 = sbr.rel (%p209) target = $region20
      $region19: #{tpu_custom_call.1} parent=11 // pred_region
        _
      $region20: #{tpu_custom_call.1} parent=11 // pred_fallthru
        _
      // Predicated region
      $region21: #{tpu_custom_call.1} parent=11 // pred_check
        %p212 = pneg %p102
      $region22: #{tpu_custom_call.1} parent=11 // pred_check_branch
        %214 = sbr.rel (%p212) target = $region24
      $region23: #{tpu_custom_call.1} parent=11 // pred_region
        _
      $region24: #{tpu_custom_call.1} parent=11 // pred_fallthru
        _
      // Predicated region
      $region25: #{tpu_custom_call.1} parent=11 // pred_check
        %p215 = pneg %p123
      $region26: #{tpu_custom_call.1} parent=11 // pred_check_branch
        %217 = sbr.rel (%p215) target = $region28
      $region27: #{tpu_custom_call.1} parent=11 // pred_region
        _
      $region28: #{tpu_custom_call.1} parent=11 // pred_fallthru
        _
      // Predicated region
      $region29: #{tpu_custom_call.1} parent=11 // pred_check
        %p218 = pneg %p144
      $region30: #{tpu_custom_call.1} parent=11 // pred_check_branch
        %220 = sbr.rel (%p218) target = $region32
      $region31: #{tpu_custom_call.1} parent=11 // pred_region
        _
      $region32: #{tpu_custom_call.1} parent=11 // pred_fallthru
        _
      // Predicated region
      $region33: #{tpu_custom_call.1} parent=11 // pred_check
        %p221 = pneg %p165
      $region34: #{tpu_custom_call.1} parent=11 // pred_check_branch
        %223 = sbr.rel (%p221) target = $region36
      $region35: #{tpu_custom_call.1} parent=11 // pred_region
        _
      $region36: #{tpu_custom_call.1} parent=11 // pred_fallthru
        _
    $region12: #{tpu_custom_call.1} parent=5 // pred_fallthru
      _
    %p224 = scmp.lt.s32.totalorder %s13, 4
    // Predicated region
    $region37: #{tpu_custom_call.1} parent=5 // pred_check
      %p225 = pneg %p224
    $region38: #{tpu_custom_call.1} parent=5 // pred_check_branch
      %227 = sbr.rel (%p225) target = $region40
    $region39: #{tpu_custom_call.1} parent=5 // pred_region
      // Predicated region
      $region41: #{tpu_custom_call.1} parent=39 // pred_check
        %p228 = pneg %p33
      $region42: #{tpu_custom_call.1} parent=39 // pred_check_branch
        %230 = sbr.rel (%p228) target = $region44
      $region43: #{tpu_custom_call.1} parent=39 // pred_region
        %s231 = smul.u32 128, %s13
        %p232 = scmp.lt.s32.totalorder %s231, 511
        %s233 = scalar_select %p232, %s231, 511
        %s234 = smul.addr %s233, 8
        %s235 = scalar_lea.vmem %s0, %s234
        %s236 = smul.u32 128, %s13
      $region44: #{tpu_custom_call.1} parent=39 // pred_fallthru
        _
    $region40: #{tpu_custom_call.1} parent=5 // pred_fallthru
      _
    %p237 = scmp.le.s32.totalorder 1, %s13
    %p238 = scmp.lt.s32.totalorder %s13, 5
    %p239 = pnand %p237, %p238
    %p240 = pneg %p239
    // Predicated region
    $region45: #{tpu_custom_call.1} parent=5 // pred_check
      _
    $region46: #{tpu_custom_call.1} parent=5 // pred_check_branch
      %242 = sbr.rel (%p239) target = $region48
    $region47: #{tpu_custom_call.1} parent=5 // pred_region
      %s243 = ssub.s32 %s13, 1
      %s244 = smul.u32 128, %s18
      %p245 = scmp.lt.s32.totalorder %s244, 511
      %s246 = scalar_select %p245, %s244, 511
      %s247 = smul.addr %s246, 8
      %s248 = scalar_lea.vmem %s0, %s247
      %p249 = pneg %p39
      %p250 = pneg %p36
      %p251 = pneg %p60
      %p252 = pneg %p57
      %p253 = pneg %p81
      %p254 = pneg %p78
      %p255 = pneg %p102
      %p256 = pneg %p99
      %p257 = pneg %p123
      %p258 = pneg %p120
      %p259 = pneg %p144
      %p260 = pneg %p141
      %p261 = pneg %p165
      %p262 = pneg %p162
      %p263 = pneg %p191
      %p264 = pneg %p188
      %s265 = smul.u32 128, %s18
      %p266 = scmp.lt.s32.totalorder %s265, 511
      %s267 = scalar_select %p266, %s265, 511
      %s268 = smul.addr %s267, 8
      %s269 = scalar_lea.vmem %s7, %s268
      %s270 = smul.u32 128, %s18
      %p271 = scmp.lt.s32.totalorder %s270, 511
      %s272 = scalar_select %p271, %s270, 511
      %s273 = smul.addr %s272, 8
      %s274 = scalar_lea.vmem %s0, %s273
      %s275 = smul.u32 128, %s18
      %s276 = smul.u32 128, %s18
      %p277 = scmp.lt.s32.totalorder %s276, 511
      %s278 = scalar_select %p277, %s276, 511
      %s279 = smul.addr %s278, 8
      %s280 = scalar_lea.vmem %s7, %s279
      %s281 = smul.u32 128, %s18
      %v282 = vld [vmem:[%s274] sm:$0xff]
      %v283 = vld [vmem:[%s274 + $0x8] sm:$0xff]
      %v284 = vld [vmem:[%s274 + $0x10] sm:$0xff]
      %v285 = vld [vmem:[%s274 + $0x18] sm:$0xff]
      %v286 = vld [vmem:[%s274 + $0x20] sm:$0xff]
      %v287 = vld [vmem:[%s274 + $0x28] sm:$0xff]
      %v288 = vld [vmem:[%s274 + $0x30] sm:$0xff]
      %v289 = vld [vmem:[%s274 + $0x38] sm:$0xff]
      %v290 = vld [vmem:[%s274 + $0x40] sm:$0xff]
      %v291 = vld [vmem:[%s274 + $0x48] sm:$0xff]
      %v292 = vld [vmem:[%s274 + $0x50] sm:$0xff]
      %v293 = vld [vmem:[%s274 + $0x58] sm:$0xff]
      %v294 = vld [vmem:[%s274 + $0x60] sm:$0xff]
      %v295 = vld [vmem:[%s274 + $0x68] sm:$0xff]
      %v296 = vld [vmem:[%s274 + $0x70] sm:$0xff]
      %v297 = vld [vmem:[%s274 + $0x78] sm:$0xff]
      %v298 = vld [vmem:[%s274 + $0x80] sm:$0xff]
      %v299 = vld [vmem:[%s274 + $0x88] sm:$0xff]
      %v300 = vld [vmem:[%s274 + $0x90] sm:$0xff]
      %v301 = vld [vmem:[%s274 + $0x98] sm:$0xff]
      %v302 = vld [vmem:[%s274 + $0xa0] sm:$0xff]
      %v303 = vld [vmem:[%s274 + $0xa8] sm:$0xff]
      %v304 = vld [vmem:[%s274 + $0xb0] sm:$0xff]
      %v305 = vld [vmem:[%s274 + $0xb8] sm:$0xff]
      %v306 = vld [vmem:[%s274 + $0xc0] sm:$0xff]
      %v307 = vld [vmem:[%s274 + $0xc8] sm:$0xff]
      %v308 = vld [vmem:[%s274 + $0xd0] sm:$0xff]
      %v309 = vld [vmem:[%s274 + $0xd8] sm:$0xff]
      %v310 = vld [vmem:[%s274 + $0xe0] sm:$0xff]
      %v311 = vld [vmem:[%s274 + $0xe8] sm:$0xff]
      %v312 = vld [vmem:[%s274 + $0xf0] sm:$0xff]
      %v313 = vld [vmem:[%s274 + $0xf8] sm:$0xff]
      %v314 = vld [vmem:[%s274 + $0x100] sm:$0xff]
      %v315 = vld [vmem:[%s274 + $0x108] sm:$0xff]
      %v316 = vld [vmem:[%s274 + $0x110] sm:$0xff]
      %v317 = vld [vmem:[%s274 + $0x118] sm:$0xff]
      %v318 = vld [vmem:[%s274 + $0x120] sm:$0xff]
      %v319 = vld [vmem:[%s274 + $0x128] sm:$0xff]
      %v320 = vld [vmem:[%s274 + $0x130] sm:$0xff]
      %v321 = vld [vmem:[%s274 + $0x138] sm:$0xff]
      %v322 = vld [vmem:[%s274 + $0x140] sm:$0xff]
      %v323 = vld [vmem:[%s274 + $0x148] sm:$0xff]
      %v324 = vld [vmem:[%s274 + $0x150] sm:$0xff]
      %v325 = vld [vmem:[%s274 + $0x158] sm:$0xff]
      %v326 = vld [vmem:[%s274 + $0x160] sm:$0xff]
      %v327 = vld [vmem:[%s274 + $0x168] sm:$0xff]
      %v328 = vld [vmem:[%s274 + $0x170] sm:$0xff]
      %v329 = vld [vmem:[%s274 + $0x178] sm:$0xff]
      %v330 = vld [vmem:[%s274 + $0x180] sm:$0xff]
      %v331 = vld [vmem:[%s274 + $0x188] sm:$0xff]
      %v332 = vld [vmem:[%s274 + $0x190] sm:$0xff]
      %v333 = vld [vmem:[%s274 + $0x198] sm:$0xff]
      %v334 = vld [vmem:[%s274 + $0x1a0] sm:$0xff]
      %v335 = vld [vmem:[%s274 + $0x1a8] sm:$0xff]
      %v336 = vld [vmem:[%s274 + $0x1b0] sm:$0xff]
      %v337 = vld [vmem:[%s274 + $0x1b8] sm:$0xff]
      %v338 = vld [vmem:[%s274 + $0x1c0] sm:$0xff]
      %v339 = vld [vmem:[%s274 + $0x1c8] sm:$0xff]
      %v340 = vld [vmem:[%s274 + $0x1d0] sm:$0xff]
      %v341 = vld [vmem:[%s274 + $0x1d8] sm:$0xff]
      %v342 = vld [vmem:[%s274 + $0x1e0] sm:$0xff]
      %v343 = vld [vmem:[%s274 + $0x1e8] sm:$0xff]
      %v344 = vld [vmem:[%s274 + $0x1f0] sm:$0xff]
      %v345 = vld [vmem:[%s274 + $0x1f8] sm:$0xff]
      %v346 = vld [vmem:[%s274 + $0x200] sm:$0xff]
      %v347 = vld [vmem:[%s274 + $0x208] sm:$0xff]
      %v348 = vld [vmem:[%s274 + $0x210] sm:$0xff]
      %v349 = vld [vmem:[%s274 + $0x218] sm:$0xff]
      %v350 = vld [vmem:[%s274 + $0x220] sm:$0xff]
      %v351 = vld [vmem:[%s274 + $0x228] sm:$0xff]
      %v352 = vld [vmem:[%s274 + $0x230] sm:$0xff]
      %v353 = vld [vmem:[%s274 + $0x238] sm:$0xff]
      %v354 = vld [vmem:[%s274 + $0x240] sm:$0xff]
      %v355 = vld [vmem:[%s274 + $0x248] sm:$0xff]
      %v356 = vld [vmem:[%s274 + $0x250] sm:$0xff]
      %v357 = vld [vmem:[%s274 + $0x258] sm:$0xff]
      %v358 = vld [vmem:[%s274 + $0x260] sm:$0xff]
      %v359 = vld [vmem:[%s274 + $0x268] sm:$0xff]
      %v360 = vld [vmem:[%s274 + $0x270] sm:$0xff]
      %v361 = vld [vmem:[%s274 + $0x278] sm:$0xff]
      %v362 = vld [vmem:[%s274 + $0x280] sm:$0xff]
      %v363 = vld [vmem:[%s274 + $0x288] sm:$0xff]
      %v364 = vld [vmem:[%s274 + $0x290] sm:$0xff]
      %v365 = vld [vmem:[%s274 + $0x298] sm:$0xff]
      %v366 = vld [vmem:[%s274 + $0x2a0] sm:$0xff]
      %v367 = vld [vmem:[%s274 + $0x2a8] sm:$0xff]
      %v368 = vld [vmem:[%s274 + $0x2b0] sm:$0xff]
      %v369 = vld [vmem:[%s274 + $0x2b8] sm:$0xff]
      %v370 = vld [vmem:[%s274 + $0x2c0] sm:$0xff]
      %v371 = vld [vmem:[%s274 + $0x2c8] sm:$0xff]
      %v372 = vld [vmem:[%s274 + $0x2d0] sm:$0xff]
      %v373 = vld [vmem:[%s274 + $0x2d8] sm:$0xff]
      %v374 = vld [vmem:[%s274 + $0x2e0] sm:$0xff]
      %v375 = vld [vmem:[%s274 + $0x2e8] sm:$0xff]
      %v376 = vld [vmem:[%s274 + $0x2f0] sm:$0xff]
      %v377 = vld [vmem:[%s274 + $0x2f8] sm:$0xff]
      %v378 = vld [vmem:[%s274 + $0x300] sm:$0xff]
      %v379 = vld [vmem:[%s274 + $0x308] sm:$0xff]
      %v380 = vld [vmem:[%s274 + $0x310] sm:$0xff]
      %v381 = vld [vmem:[%s274 + $0x318] sm:$0xff]
      %v382 = vld [vmem:[%s274 + $0x320] sm:$0xff]
      %v383 = vld [vmem:[%s274 + $0x328] sm:$0xff]
      %v384 = vld [vmem:[%s274 + $0x330] sm:$0xff]
      %v385 = vld [vmem:[%s274 + $0x338] sm:$0xff]
      %v386 = vld [vmem:[%s274 + $0x340] sm:$0xff]
      %v387 = vld [vmem:[%s274 + $0x348] sm:$0xff]
      %v388 = vld [vmem:[%s274 + $0x350] sm:$0xff]
      %v389 = vld [vmem:[%s274 + $0x358] sm:$0xff]
      %v390 = vld [vmem:[%s274 + $0x360] sm:$0xff]
      %v391 = vld [vmem:[%s274 + $0x368] sm:$0xff]
      %v392 = vld [vmem:[%s274 + $0x370] sm:$0xff]
      %v393 = vld [vmem:[%s274 + $0x378] sm:$0xff]
      %v394 = vld [vmem:[%s274 + $0x380] sm:$0xff]
      %v395 = vld [vmem:[%s274 + $0x388] sm:$0xff]
      %v396 = vld [vmem:[%s274 + $0x390] sm:$0xff]
      %v397 = vld [vmem:[%s274 + $0x398] sm:$0xff]
      %v398 = vld [vmem:[%s274 + $0x3a0] sm:$0xff]
      %v399 = vld [vmem:[%s274 + $0x3a8] sm:$0xff]
      %v400 = vld [vmem:[%s274 + $0x3b0] sm:$0xff]
      %v401 = vld [vmem:[%s274 + $0x3b8] sm:$0xff]
      %v402 = vld [vmem:[%s274 + $0x3c0] sm:$0xff]
      %v403 = vld [vmem:[%s274 + $0x3c8] sm:$0xff]
      %v404 = vld [vmem:[%s274 + $0x3d0] sm:$0xff]
      %v405 = vld [vmem:[%s274 + $0x3d8] sm:$0xff]
      %v406 = vld [vmem:[%s274 + $0x3e0] sm:$0xff]
      %v407 = vld [vmem:[%s274 + $0x3e8] sm:$0xff]
      %v408 = vld [vmem:[%s274 + $0x3f0] sm:$0xff]
      %v409 = vld [vmem:[%s274 + $0x3f8] sm:$0xff]
      %v410 = vld [vmem:[%s1] sm:$0xff]
      %v411 = vld [vmem:[%s2] sm:$0x1]
      %v413 = vperm.slane %v411, 0
      %vm415 = vcmask 64512
      %v417 = vsel %vm415, %v282, 0
      %v420 = vsel %vm415, %v283, 0
      %v423 = vsel %vm415, %v284, 0
      %v426 = vsel %vm415, %v285, 0
      %v429 = vsel %vm415, %v286, 0
      %v432 = vsel %vm415, %v287, 0
      %v435 = vsel %vm415, %v288, 0
      %v438 = vsel %vm415, %v289, 0
      %v441 = vsel %vm415, %v290, 0
      %v444 = vsel %vm415, %v291, 0
      %v447 = vsel %vm415, %v292, 0
      %v450 = vsel %vm415, %v293, 0
      %v453 = vsel %vm415, %v294, 0
      %v456 = vsel %vm415, %v295, 0
      %v459 = vsel %vm415, %v296, 0
      %v462 = vsel %vm415, %v297, 0
      %v465 = vsel %vm415, %v298, 0
      %v468 = vsel %vm415, %v299, 0
      %v471 = vsel %vm415, %v300, 0
      %v474 = vsel %vm415, %v301, 0
      %v477 = vsel %vm415, %v302, 0
      %v480 = vsel %vm415, %v303, 0
      %v483 = vsel %vm415, %v304, 0
      %v486 = vsel %vm415, %v305, 0
      %v489 = vsel %vm415, %v306, 0
      %v492 = vsel %vm415, %v307, 0
      %v495 = vsel %vm415, %v308, 0
      %v498 = vsel %vm415, %v309, 0
      %v501 = vsel %vm415, %v310, 0
      %v504 = vsel %vm415, %v311, 0
      %v507 = vsel %vm415, %v312, 0
      %v510 = vsel %vm415, %v313, 0
      %v513 = vsel %vm415, %v314, 0
      %v516 = vsel %vm415, %v315, 0
      %v519 = vsel %vm415, %v316, 0
      %v522 = vsel %vm415, %v317, 0
      %v525 = vsel %vm415, %v318, 0
      %v528 = vsel %vm415, %v319, 0
      %v531 = vsel %vm415, %v320, 0
      %v534 = vsel %vm415, %v321, 0
      %v537 = vsel %vm415, %v322, 0
      %v540 = vsel %vm415, %v323, 0
      %v543 = vsel %vm415, %v324, 0
      %v546 = vsel %vm415, %v325, 0
      %v549 = vsel %vm415, %v326, 0
      %v552 = vsel %vm415, %v327, 0
      %v555 = vsel %vm415, %v328, 0
      %v558 = vsel %vm415, %v329, 0
      %v561 = vsel %vm415, %v330, 0
      %v564 = vsel %vm415, %v331, 0
      %v567 = vsel %vm415, %v332, 0
      %v570 = vsel %vm415, %v333, 0
      %v573 = vsel %vm415, %v334, 0
      %v576 = vsel %vm415, %v335, 0
      %v579 = vsel %vm415, %v336, 0
      %v582 = vsel %vm415, %v337, 0
      %v585 = vsel %vm415, %v338, 0
      %v588 = vsel %vm415, %v339, 0
      %v591 = vsel %vm415, %v340, 0
      %v594 = vsel %vm415, %v341, 0
      %v597 = vsel %vm415, %v342, 0
      %v600 = vsel %vm415, %v343, 0
      %v603 = vsel %vm415, %v344, 0
      %v606 = vsel %vm415, %v345, 0
      %v609 = vsel %vm415, %v346, 0
      %v612 = vsel %vm415, %v347, 0
      %v615 = vsel %vm415, %v348, 0
      %v618 = vsel %vm415, %v349, 0
      %v621 = vsel %vm415, %v350, 0
      %v624 = vsel %vm415, %v351, 0
      %v627 = vsel %vm415, %v352, 0
      %v630 = vsel %vm415, %v353, 0
      %v633 = vsel %vm415, %v354, 0
      %v636 = vsel %vm415, %v355, 0
      %v639 = vsel %vm415, %v356, 0
      %v642 = vsel %vm415, %v357, 0
      %v645 = vsel %vm415, %v358, 0
      %v648 = vsel %vm415, %v359, 0
      %v651 = vsel %vm415, %v360, 0
      %v654 = vsel %vm415, %v361, 0
      %v657 = vsel %vm415, %v362, 0
      %v660 = vsel %vm415, %v363, 0
      %v663 = vsel %vm415, %v364, 0
      %v666 = vsel %vm415, %v365, 0
      %v669 = vsel %vm415, %v366, 0
      %v672 = vsel %vm415, %v367, 0
      %v675 = vsel %vm415, %v368, 0
      %v678 = vsel %vm415, %v369, 0
      %v681 = vsel %vm415, %v370, 0
      %v684 = vsel %vm415, %v371, 0
      %v687 = vsel %vm415, %v372, 0
      %v690 = vsel %vm415, %v373, 0
      %v693 = vsel %vm415, %v374, 0
      %v696 = vsel %vm415, %v375, 0
      %v699 = vsel %vm415, %v376, 0
      %v702 = vsel %vm415, %v377, 0
      %v705 = vsel %vm415, %v378, 0
      %v708 = vsel %vm415, %v379, 0
      %v711 = vsel %vm415, %v380, 0
      %v714 = vsel %vm415, %v381, 0
      %v717 = vsel %vm415, %v382, 0
      %v720 = vsel %vm415, %v383, 0
      %v723 = vsel %vm415, %v384, 0
      %v726 = vsel %vm415, %v385, 0
      %v729 = vsel %vm415, %v386, 0
      %v732 = vsel %vm415, %v387, 0
      %v735 = vsel %vm415, %v388, 0
      %v738 = vsel %vm415, %v389, 0
      %v741 = vsel %vm415, %v390, 0
      %v744 = vsel %vm415, %v391, 0
      %v747 = vsel %vm415, %v392, 0
      %v750 = vsel %vm415, %v393, 0
      %v753 = vsel %vm415, %v394, 0
      %v756 = vsel %vm415, %v395, 0
      %v759 = vsel %vm415, %v396, 0
      %v762 = vsel %vm415, %v397, 0
      %v765 = vsel %vm415, %v398, 0
      %v768 = vsel %vm415, %v399, 0
      %v771 = vsel %vm415, %v400, 0
      %v774 = vsel %vm415, %v401, 0
      %v777 = vsel %vm415, %v402, 0
      %v780 = vsel %vm415, %v403, 0
      %v783 = vsel %vm415, %v404, 0
      %v786 = vsel %vm415, %v405, 0
      %v789 = vsel %vm415, %v406, 0
      %v792 = vsel %vm415, %v407, 0
      %v795 = vsel %vm415, %v408, 0
      %v798 = vsel %vm415, %v409, 0
      %800 = vmatpush.msra.mxu0 0.0
      %801 = vmatpush.msra.mxu0 0.0
      %802 = vmatpush.msra.mxu0 0.0
      %803 = vmatpush.msra.mxu0 0.0
      %804 = vmatpush.msra.mxu0 0.0
      %805 = vmatpush.msra.mxu0 0.0
      %806 = vmatpush.msra.mxu0 0.0
      %807 = vmatpush.msra.mxu0 0.0
      %808 = vmatpush.msra.mxu0 0.0
      %809 = vmatpush.msra.mxu0 0.0
      %810 = vmatpush.msra.mxu0 0.0
      %811 = vmatpush.msra.mxu0 0.0
      %812 = vmatpush.msra.mxu0 0.0
      %813 = vmatpush.msra.mxu0 0.0
      %814 = vmatpush.msra.mxu0 0.0
      %815 = vmatpush.msra.mxu0 %v410
      %816 = vmatmul.f32.gmra.mxu0 %v417
      %v817 = vpop.f32.mrf.mxu0
      %v818 = vadd.f32 %v413, %v817
      %819 = vmatmul.f32.gmra.mxu0 %v420
      %v820 = vpop.f32.mrf.mxu0
      %v821 = vadd.f32 %v413, %v820
      %822 = vmatmul.f32.gmra.mxu0 %v423
      %v823 = vpop.f32.mrf.mxu0
      %v824 = vadd.f32 %v413, %v823
      %825 = vmatmul.f32.gmra.mxu0 %v426
      %v826 = vpop.f32.mrf.mxu0
      %v827 = vadd.f32 %v413, %v826
      %828 = vmatmul.f32.gmra.mxu0 %v429
      %v829 = vpop.f32.mrf.mxu0
      %v830 = vadd.f32 %v413, %v829
      %831 = vmatmul.f32.gmra.mxu0 %v432
      %v832 = vpop.f32.mrf.mxu0
      %v833 = vadd.f32 %v413, %v832
      %834 = vmatmul.f32.gmra.mxu0 %v435
      %v835 = vpop.f32.mrf.mxu0
      %v836 = vadd.f32 %v413, %v835
      %837 = vmatmul.f32.gmra.mxu0 %v438
      %v838 = vpop.f32.mrf.mxu0
      %v839 = vadd.f32 %v413, %v838
      %840 = vmatmul.f32.gmra.mxu0 %v441
      %v841 = vpop.f32.mrf.mxu0
      %v842 = vadd.f32 %v413, %v841
      %843 = vmatmul.f32.gmra.mxu0 %v444
      %v844 = vpop.f32.mrf.mxu0
      %v845 = vadd.f32 %v413, %v844
      %846 = vmatmul.f32.gmra.mxu0 %v447
      %v847 = vpop.f32.mrf.mxu0
      %v848 = vadd.f32 %v413, %v847
      %849 = vmatmul.f32.gmra.mxu0 %v450
      %v850 = vpop.f32.mrf.mxu0
      %v851 = vadd.f32 %v413, %v850
      %852 = vmatmul.f32.gmra.mxu0 %v453
      %v853 = vpop.f32.mrf.mxu0
      %v854 = vadd.f32 %v413, %v853
      %855 = vmatmul.f32.gmra.mxu0 %v456
      %v856 = vpop.f32.mrf.mxu0
      %v857 = vadd.f32 %v413, %v856
      %858 = vmatmul.f32.gmra.mxu0 %v459
      %v859 = vpop.f32.mrf.mxu0
      %v860 = vadd.f32 %v413, %v859
      %861 = vmatmul.f32.gmra.mxu0 %v462
      %v862 = vpop.f32.mrf.mxu0
      %v863 = vadd.f32 %v413, %v862
      %864 = vmatmul.f32.gmra.mxu0 %v465
      %v865 = vpop.f32.mrf.mxu0
      %v866 = vadd.f32 %v413, %v865
      %867 = vmatmul.f32.gmra.mxu0 %v468
      %v868 = vpop.f32.mrf.mxu0
      %v869 = vadd.f32 %v413, %v868
      %870 = vmatmul.f32.gmra.mxu0 %v471
      %v871 = vpop.f32.mrf.mxu0
      %v872 = vadd.f32 %v413, %v871
      %873 = vmatmul.f32.gmra.mxu0 %v474
      %v874 = vpop.f32.mrf.mxu0
      %v875 = vadd.f32 %v413, %v874
      %876 = vmatmul.f32.gmra.mxu0 %v477
      %v877 = vpop.f32.mrf.mxu0
      %v878 = vadd.f32 %v413, %v877
      %879 = vmatmul.f32.gmra.mxu0 %v480
      %v880 = vpop.f32.mrf.mxu0
      %v881 = vadd.f32 %v413, %v880
      %882 = vmatmul.f32.gmra.mxu0 %v483
      %v883 = vpop.f32.mrf.mxu0
      %v884 = vadd.f32 %v413, %v883
      %885 = vmatmul.f32.gmra.mxu0 %v486
      %v886 = vpop.f32.mrf.mxu0
      %v887 = vadd.f32 %v413, %v886
      %888 = vmatmul.f32.gmra.mxu0 %v489
      %v889 = vpop.f32.mrf.mxu0
      %v890 = vadd.f32 %v413, %v889
      %891 = vmatmul.f32.gmra.mxu0 %v492
      %v892 = vpop.f32.mrf.mxu0
      %v893 = vadd.f32 %v413, %v892
      %894 = vmatmul.f32.gmra.mxu0 %v495
      %v895 = vpop.f32.mrf.mxu0
      %v896 = vadd.f32 %v413, %v895
      %897 = vmatmul.f32.gmra.mxu0 %v498
      %v898 = vpop.f32.mrf.mxu0
      %v899 = vadd.f32 %v413, %v898
      %900 = vmatmul.f32.gmra.mxu0 %v501
      %v901 = vpop.f32.mrf.mxu0
      %v902 = vadd.f32 %v413, %v901
      %903 = vmatmul.f32.gmra.mxu0 %v504
      %v904 = vpop.f32.mrf.mxu0
      %v905 = vadd.f32 %v413, %v904
      %906 = vmatmul.f32.gmra.mxu0 %v507
      %v907 = vpop.f32.mrf.mxu0
      %v908 = vadd.f32 %v413, %v907
      %909 = vmatmul.f32.gmra.mxu0 %v510
      %v910 = vpop.f32.mrf.mxu0
      %v911 = vadd.f32 %v413, %v910
      %912 = vmatmul.f32.gmra.mxu0 %v513
      %v913 = vpop.f32.mrf.mxu0
      %v914 = vadd.f32 %v413, %v913
      %915 = vmatmul.f32.gmra.mxu0 %v516
      %v916 = vpop.f32.mrf.mxu0
      %v917 = vadd.f32 %v413, %v916
      %918 = vmatmul.f32.gmra.mxu0 %v519
      %v919 = vpop.f32.mrf.mxu0
      %v920 = vadd.f32 %v413, %v919
      %921 = vmatmul.f32.gmra.mxu0 %v522
      %v922 = vpop.f32.mrf.mxu0
      %v923 = vadd.f32 %v413, %v922
      %924 = vmatmul.f32.gmra.mxu0 %v525
      %v925 = vpop.f32.mrf.mxu0
      %v926 = vadd.f32 %v413, %v925
      %927 = vmatmul.f32.gmra.mxu0 %v528
      %v928 = vpop.f32.mrf.mxu0
      %v929 = vadd.f32 %v413, %v928
      %930 = vmatmul.f32.gmra.mxu0 %v531
      %v931 = vpop.f32.mrf.mxu0
      %v932 = vadd.f32 %v413, %v931
      %933 = vmatmul.f32.gmra.mxu0 %v534
      %v934 = vpop.f32.mrf.mxu0
      %v935 = vadd.f32 %v413, %v934
      %936 = vmatmul.f32.gmra.mxu0 %v537
      %v937 = vpop.f32.mrf.mxu0
      %v938 = vadd.f32 %v413, %v937
      %939 = vmatmul.f32.gmra.mxu0 %v540
      %v940 = vpop.f32.mrf.mxu0
      %v941 = vadd.f32 %v413, %v940
      %942 = vmatmul.f32.gmra.mxu0 %v543
      %v943 = vpop.f32.mrf.mxu0
      %v944 = vadd.f32 %v413, %v943
      %945 = vmatmul.f32.gmra.mxu0 %v546
      %v946 = vpop.f32.mrf.mxu0
      %v947 = vadd.f32 %v413, %v946
      %948 = vmatmul.f32.gmra.mxu0 %v549
      %v949 = vpop.f32.mrf.mxu0
      %v950 = vadd.f32 %v413, %v949
      %951 = vmatmul.f32.gmra.mxu0 %v552
      %v952 = vpop.f32.mrf.mxu0
      %v953 = vadd.f32 %v413, %v952
      %954 = vmatmul.f32.gmra.mxu0 %v555
      %v955 = vpop.f32.mrf.mxu0
      %v956 = vadd.f32 %v413, %v955
      %957 = vmatmul.f32.gmra.mxu0 %v558
      %v958 = vpop.f32.mrf.mxu0
      %v959 = vadd.f32 %v413, %v958
      %960 = vmatmul.f32.gmra.mxu0 %v561
      %v961 = vpop.f32.mrf.mxu0
      %v962 = vadd.f32 %v413, %v961
      %963 = vmatmul.f32.gmra.mxu0 %v564
      %v964 = vpop.f32.mrf.mxu0
      %v965 = vadd.f32 %v413, %v964
      %966 = vmatmul.f32.gmra.mxu0 %v567
      %v967 = vpop.f32.mrf.mxu0
      %v968 = vadd.f32 %v413, %v967
      %969 = vmatmul.f32.gmra.mxu0 %v570
      %v970 = vpop.f32.mrf.mxu0
      %v971 = vadd.f32 %v413, %v970
      %972 = vmatmul.f32.gmra.mxu0 %v573
      %v973 = vpop.f32.mrf.mxu0
      %v974 = vadd.f32 %v413, %v973
      %975 = vmatmul.f32.gmra.mxu0 %v576
      %v976 = vpop.f32.mrf.mxu0
      %v977 = vadd.f32 %v413, %v976
      %978 = vmatmul.f32.gmra.mxu0 %v579
      %v979 = vpop.f32.mrf.mxu0
      %v980 = vadd.f32 %v413, %v979
      %981 = vmatmul.f32.gmra.mxu0 %v582
      %v982 = vpop.f32.mrf.mxu0
      %v983 = vadd.f32 %v413, %v982
      %984 = vmatmul.f32.gmra.mxu0 %v585
      %v985 = vpop.f32.mrf.mxu0
      %v986 = vadd.f32 %v413, %v985
      %987 = vmatmul.f32.gmra.mxu0 %v588
      %v988 = vpop.f32.mrf.mxu0
      %v989 = vadd.f32 %v413, %v988
      %990 = vmatmul.f32.gmra.mxu0 %v591
      %v991 = vpop.f32.mrf.mxu0
      %v992 = vadd.f32 %v413, %v991
      %993 = vmatmul.f32.gmra.mxu0 %v594
      %v994 = vpop.f32.mrf.mxu0
      %v995 = vadd.f32 %v413, %v994
      %996 = vmatmul.f32.gmra.mxu0 %v597
      %v997 = vpop.f32.mrf.mxu0
      %v998 = vadd.f32 %v413, %v997
      %999 = vmatmul.f32.gmra.mxu0 %v600
      %v1000 = vpop.f32.mrf.mxu0
      %v1001 = vadd.f32 %v413, %v1000
      %1002 = vmatmul.f32.gmra.mxu0 %v603
      %v1003 = vpop.f32.mrf.mxu0
      %v1004 = vadd.f32 %v413, %v1003
      %1005 = vmatmul.f32.gmra.mxu0 %v606
      %v1006 = vpop.f32.mrf.mxu0
      %v1007 = vadd.f32 %v413, %v1006
      %1008 = vmatmul.f32.gmra.mxu0 %v609
      %v1009 = vpop.f32.mrf.mxu0
      %v1010 = vadd.f32 %v413, %v1009
      %1011 = vmatmul.f32.gmra.mxu0 %v612
      %v1012 = vpop.f32.mrf.mxu0
      %v1013 = vadd.f32 %v413, %v1012
      %1014 = vmatmul.f32.gmra.mxu0 %v615
      %v1015 = vpop.f32.mrf.mxu0
      %v1016 = vadd.f32 %v413, %v1015
      %1017 = vmatmul.f32.gmra.mxu0 %v618
      %v1018 = vpop.f32.mrf.mxu0
      %v1019 = vadd.f32 %v413, %v1018
      %1020 = vmatmul.f32.gmra.mxu0 %v621
      %v1021 = vpop.f32.mrf.mxu0
      %v1022 = vadd.f32 %v413, %v1021
      %1023 = vmatmul.f32.gmra.mxu0 %v624
      %v1024 = vpop.f32.mrf.mxu0
      %v1025 = vadd.f32 %v413, %v1024
      %1026 = vmatmul.f32.gmra.mxu0 %v627
      %v1027 = vpop.f32.mrf.mxu0
      %v1028 = vadd.f32 %v413, %v1027
      %1029 = vmatmul.f32.gmra.mxu0 %v630
      %v1030 = vpop.f32.mrf.mxu0
      %v1031 = vadd.f32 %v413, %v1030
      %1032 = vmatmul.f32.gmra.mxu0 %v633
      %v1033 = vpop.f32.mrf.mxu0
      %v1034 = vadd.f32 %v413, %v1033
      %1035 = vmatmul.f32.gmra.mxu0 %v636
      %v1036 = vpop.f32.mrf.mxu0
      %v1037 = vadd.f32 %v413, %v1036
      %1038 = vmatmul.f32.gmra.mxu0 %v639
      %v1039 = vpop.f32.mrf.mxu0
      %v1040 = vadd.f32 %v413, %v1039
      %1041 = vmatmul.f32.gmra.mxu0 %v642
      %v1042 = vpop.f32.mrf.mxu0
      %v1043 = vadd.f32 %v413, %v1042
      %1044 = vmatmul.f32.gmra.mxu0 %v645
      %v1045 = vpop.f32.mrf.mxu0
      %v1046 = vadd.f32 %v413, %v1045
      %1047 = vmatmul.f32.gmra.mxu0 %v648
      %v1048 = vpop.f32.mrf.mxu0
      %v1049 = vadd.f32 %v413, %v1048
      %1050 = vmatmul.f32.gmra.mxu0 %v651
      %v1051 = vpop.f32.mrf.mxu0
      %v1052 = vadd.f32 %v413, %v1051
      %1053 = vmatmul.f32.gmra.mxu0 %v654
      %v1054 = vpop.f32.mrf.mxu0
      %v1055 = vadd.f32 %v413, %v1054
      %1056 = vmatmul.f32.gmra.mxu0 %v657
      %v1057 = vpop.f32.mrf.mxu0
      %v1058 = vadd.f32 %v413, %v1057
      %1059 = vmatmul.f32.gmra.mxu0 %v660
      %v1060 = vpop.f32.mrf.mxu0
      %v1061 = vadd.f32 %v413, %v1060
      %1062 = vmatmul.f32.gmra.mxu0 %v663
      %v1063 = vpop.f32.mrf.mxu0
      %v1064 = vadd.f32 %v413, %v1063
      %1065 = vmatmul.f32.gmra.mxu0 %v666
      %v1066 = vpop.f32.mrf.mxu0
      %v1067 = vadd.f32 %v413, %v1066
      %1068 = vmatmul.f32.gmra.mxu0 %v669
      %v1069 = vpop.f32.mrf.mxu0
      %v1070 = vadd.f32 %v413, %v1069
      %1071 = vmatmul.f32.gmra.mxu0 %v672
      %v1072 = vpop.f32.mrf.mxu0
      %v1073 = vadd.f32 %v413, %v1072
      %1074 = vmatmul.f32.gmra.mxu0 %v675
      %v1075 = vpop.f32.mrf.mxu0
      %v1076 = vadd.f32 %v413, %v1075
      %1077 = vmatmul.f32.gmra.mxu0 %v678
      %v1078 = vpop.f32.mrf.mxu0
      %v1079 = vadd.f32 %v413, %v1078
      %1080 = vmatmul.f32.gmra.mxu0 %v681
      %v1081 = vpop.f32.mrf.mxu0
      %v1082 = vadd.f32 %v413, %v1081
      %1083 = vmatmul.f32.gmra.mxu0 %v684
      %v1084 = vpop.f32.mrf.mxu0
      %v1085 = vadd.f32 %v413, %v1084
      %1086 = vmatmul.f32.gmra.mxu0 %v687
      %v1087 = vpop.f32.mrf.mxu0
      %v1088 = vadd.f32 %v413, %v1087
      %1089 = vmatmul.f32.gmra.mxu0 %v690
      %v1090 = vpop.f32.mrf.mxu0
      %v1091 = vadd.f32 %v413, %v1090
      %1092 = vmatmul.f32.gmra.mxu0 %v693
      %v1093 = vpop.f32.mrf.mxu0
      %v1094 = vadd.f32 %v413, %v1093
      %1095 = vmatmul.f32.gmra.mxu0 %v696
      %v1096 = vpop.f32.mrf.mxu0
      %v1097 = vadd.f32 %v413, %v1096
      %1098 = vmatmul.f32.gmra.mxu0 %v699
      %v1099 = vpop.f32.mrf.mxu0
      %v1100 = vadd.f32 %v413, %v1099
      %1101 = vmatmul.f32.gmra.mxu0 %v702
      %v1102 = vpop.f32.mrf.mxu0
      %v1103 = vadd.f32 %v413, %v1102
      %1104 = vmatmul.f32.gmra.mxu0 %v705
      %v1105 = vpop.f32.mrf.mxu0
      %v1106 = vadd.f32 %v413, %v1105
      %1107 = vmatmul.f32.gmra.mxu0 %v708
      %v1108 = vpop.f32.mrf.mxu0
      %v1109 = vadd.f32 %v413, %v1108
      %1110 = vmatmul.f32.gmra.mxu0 %v711
      %v1111 = vpop.f32.mrf.mxu0
      %v1112 = vadd.f32 %v413, %v1111
      %1113 = vmatmul.f32.gmra.mxu0 %v714
      %v1114 = vpop.f32.mrf.mxu0
      %v1115 = vadd.f32 %v413, %v1114
      %1116 = vmatmul.f32.gmra.mxu0 %v717
      %v1117 = vpop.f32.mrf.mxu0
      %v1118 = vadd.f32 %v413, %v1117
      %1119 = vmatmul.f32.gmra.mxu0 %v720
      %v1120 = vpop.f32.mrf.mxu0
      %v1121 = vadd.f32 %v413, %v1120
      %1122 = vmatmul.f32.gmra.mxu0 %v723
      %v1123 = vpop.f32.mrf.mxu0
      %v1124 = vadd.f32 %v413, %v1123
      %1125 = vmatmul.f32.gmra.mxu0 %v726
      %v1126 = vpop.f32.mrf.mxu0
      %v1127 = vadd.f32 %v413, %v1126
      %1128 = vmatmul.f32.gmra.mxu0 %v729
      %v1129 = vpop.f32.mrf.mxu0
      %v1130 = vadd.f32 %v413, %v1129
      %1131 = vmatmul.f32.gmra.mxu0 %v732
      %v1132 = vpop.f32.mrf.mxu0
      %v1133 = vadd.f32 %v413, %v1132
      %1134 = vmatmul.f32.gmra.mxu0 %v735
      %v1135 = vpop.f32.mrf.mxu0
      %v1136 = vadd.f32 %v413, %v1135
      %1137 = vmatmul.f32.gmra.mxu0 %v738
      %v1138 = vpop.f32.mrf.mxu0
      %v1139 = vadd.f32 %v413, %v1138
      %1140 = vmatmul.f32.gmra.mxu0 %v741
      %v1141 = vpop.f32.mrf.mxu0
      %v1142 = vadd.f32 %v413, %v1141
      %1143 = vmatmul.f32.gmra.mxu0 %v744
      %v1144 = vpop.f32.mrf.mxu0
      %v1145 = vadd.f32 %v413, %v1144
      %1146 = vmatmul.f32.gmra.mxu0 %v747
      %v1147 = vpop.f32.mrf.mxu0
      %v1148 = vadd.f32 %v413, %v1147
      %1149 = vmatmul.f32.gmra.mxu0 %v750
      %v1150 = vpop.f32.mrf.mxu0
      %v1151 = vadd.f32 %v413, %v1150
      %1152 = vmatmul.f32.gmra.mxu0 %v753
      %v1153 = vpop.f32.mrf.mxu0
      %v1154 = vadd.f32 %v413, %v1153
      %1155 = vmatmul.f32.gmra.mxu0 %v756
      %v1156 = vpop.f32.mrf.mxu0
      %v1157 = vadd.f32 %v413, %v1156
      %1158 = vmatmul.f32.gmra.mxu0 %v759
      %v1159 = vpop.f32.mrf.mxu0
      %v1160 = vadd.f32 %v413, %v1159
      %1161 = vmatmul.f32.gmra.mxu0 %v762
      %v1162 = vpop.f32.mrf.mxu0
      %v1163 = vadd.f32 %v413, %v1162
      %1164 = vmatmul.f32.gmra.mxu0 %v765
      %v1165 = vpop.f32.mrf.mxu0
      %v1166 = vadd.f32 %v413, %v1165
      %1167 = vmatmul.f32.gmra.mxu0 %v768
      %v1168 = vpop.f32.mrf.mxu0
      %v1169 = vadd.f32 %v413, %v1168
      %1170 = vmatmul.f32.gmra.mxu0 %v771
      %v1171 = vpop.f32.mrf.mxu0
      %v1172 = vadd.f32 %v413, %v1171
      %1173 = vmatmul.f32.gmra.mxu0 %v774
      %v1174 = vpop.f32.mrf.mxu0
      %v1175 = vadd.f32 %v413, %v1174
      %1176 = vmatmul.f32.gmra.mxu0 %v777
      %v1177 = vpop.f32.mrf.mxu0
      %v1178 = vadd.f32 %v413, %v1177
      %1179 = vmatmul.f32.gmra.mxu0 %v780
      %v1180 = vpop.f32.mrf.mxu0
      %v1181 = vadd.f32 %v413, %v1180
      %1182 = vmatmul.f32.gmra.mxu0 %v783
      %v1183 = vpop.f32.mrf.mxu0
      %v1184 = vadd.f32 %v413, %v1183
      %1185 = vmatmul.f32.gmra.mxu0 %v786
      %v1186 = vpop.f32.mrf.mxu0
      %v1187 = vadd.f32 %v413, %v1186
      %1188 = vmatmul.f32.gmra.mxu0 %v789
      %v1189 = vpop.f32.mrf.mxu0
      %v1190 = vadd.f32 %v413, %v1189
      %1191 = vmatmul.f32.gmra.mxu0 %v792
      %v1192 = vpop.f32.mrf.mxu0
      %v1193 = vadd.f32 %v413, %v1192
      %1194 = vmatmul.f32.gmra.mxu0 %v795
      %v1195 = vpop.f32.mrf.mxu0
      %v1196 = vadd.f32 %v413, %v1195
      %1197 = vmatmul.f32.gmra.mxu0 %v798
      %v1198 = vpop.f32.mrf.mxu0
      %v1199 = vadd.f32 %v413, %v1198
      %1200 = vdwg.mxu0
      %v1201 = vmax.f32 %v818, 0.0
      %v1202 = vmax.f32 %v821, 0.0
      %v1203 = vmax.f32 %v824, 0.0
      %v1204 = vmax.f32 %v827, 0.0
      %v1205 = vmax.f32 %v830, 0.0
      %v1206 = vmax.f32 %v833, 0.0
      %v1207 = vmax.f32 %v836, 0.0
      %v1208 = vmax.f32 %v839, 0.0
      %v1209 = vmax.f32 %v842, 0.0
      %v1210 = vmax.f32 %v845, 0.0
      %v1211 = vmax.f32 %v848, 0.0
      %v1212 = vmax.f32 %v851, 0.0
      %v1213 = vmax.f32 %v854, 0.0
      %v1214 = vmax.f32 %v857, 0.0
      %v1215 = vmax.f32 %v860, 0.0
      %v1216 = vmax.f32 %v863, 0.0
      %v1217 = vmax.f32 %v866, 0.0
      %v1218 = vmax.f32 %v869, 0.0
      %v1219 = vmax.f32 %v872, 0.0
      %v1220 = vmax.f32 %v875, 0.0
      %v1221 = vmax.f32 %v878, 0.0
      %v1222 = vmax.f32 %v881, 0.0
      %v1223 = vmax.f32 %v884, 0.0
      %v1224 = vmax.f32 %v887, 0.0
      %v1225 = vmax.f32 %v890, 0.0
      %v1226 = vmax.f32 %v893, 0.0
      %v1227 = vmax.f32 %v896, 0.0
      %v1228 = vmax.f32 %v899, 0.0
      %v1229 = vmax.f32 %v902, 0.0
      %v1230 = vmax.f32 %v905, 0.0
      %v1231 = vmax.f32 %v908, 0.0
      %v1232 = vmax.f32 %v911, 0.0
      %v1233 = vmax.f32 %v914, 0.0
      %v1234 = vmax.f32 %v917, 0.0
      %v1235 = vmax.f32 %v920, 0.0
      %v1236 = vmax.f32 %v923, 0.0
      %v1237 = vmax.f32 %v926, 0.0
      %v1238 = vmax.f32 %v929, 0.0
      %v1239 = vmax.f32 %v932, 0.0
      %v1240 = vmax.f32 %v935, 0.0
      %v1241 = vmax.f32 %v938, 0.0
      %v1242 = vmax.f32 %v941, 0.0
      %v1243 = vmax.f32 %v944, 0.0
      %v1244 = vmax.f32 %v947, 0.0
      %v1245 = vmax.f32 %v950, 0.0
      %v1246 = vmax.f32 %v953, 0.0
      %v1247 = vmax.f32 %v956, 0.0
      %v1248 = vmax.f32 %v959, 0.0
      %v1249 = vmax.f32 %v962, 0.0
      %v1250 = vmax.f32 %v965, 0.0
      %v1251 = vmax.f32 %v968, 0.0
      %v1252 = vmax.f32 %v971, 0.0
      %v1253 = vmax.f32 %v974, 0.0
      %v1254 = vmax.f32 %v977, 0.0
      %v1255 = vmax.f32 %v980, 0.0
      %v1256 = vmax.f32 %v983, 0.0
      %v1257 = vmax.f32 %v986, 0.0
      %v1258 = vmax.f32 %v989, 0.0
      %v1259 = vmax.f32 %v992, 0.0
      %v1260 = vmax.f32 %v995, 0.0
      %v1261 = vmax.f32 %v998, 0.0
      %v1262 = vmax.f32 %v1001, 0.0
      %v1263 = vmax.f32 %v1004, 0.0
      %v1264 = vmax.f32 %v1007, 0.0
      %v1265 = vmax.f32 %v1010, 0.0
      %v1266 = vmax.f32 %v1013, 0.0
      %v1267 = vmax.f32 %v1016, 0.0
      %v1268 = vmax.f32 %v1019, 0.0
      %v1269 = vmax.f32 %v1022, 0.0
      %v1270 = vmax.f32 %v1025, 0.0
      %v1271 = vmax.f32 %v1028, 0.0
      %v1272 = vmax.f32 %v1031, 0.0
      %v1273 = vmax.f32 %v1034, 0.0
      %v1274 = vmax.f32 %v1037, 0.0
      %v1275 = vmax.f32 %v1040, 0.0
      %v1276 = vmax.f32 %v1043, 0.0
      %v1277 = vmax.f32 %v1046, 0.0
      %v1278 = vmax.f32 %v1049, 0.0
      %v1279 = vmax.f32 %v1052, 0.0
      %v1280 = vmax.f32 %v1055, 0.0
      %v1281 = vmax.f32 %v1058, 0.0
      %v1282 = vmax.f32 %v1061, 0.0
      %v1283 = vmax.f32 %v1064, 0.0
      %v1284 = vmax.f32 %v1067, 0.0
      %v1285 = vmax.f32 %v1070, 0.0
      %v1286 = vmax.f32 %v1073, 0.0
      %v1287 = vmax.f32 %v1076, 0.0
      %v1288 = vmax.f32 %v1079, 0.0
      %v1289 = vmax.f32 %v1082, 0.0
      %v1290 = vmax.f32 %v1085, 0.0
      %v1291 = vmax.f32 %v1088, 0.0
      %v1292 = vmax.f32 %v1091, 0.0
      %v1293 = vmax.f32 %v1094, 0.0
      %v1294 = vmax.f32 %v1097, 0.0
      %v1295 = vmax.f32 %v1100, 0.0
      %v1296 = vmax.f32 %v1103, 0.0
      %v1297 = vmax.f32 %v1106, 0.0
      %v1298 = vmax.f32 %v1109, 0.0
      %v1299 = vmax.f32 %v1112, 0.0
      %v1300 = vmax.f32 %v1115, 0.0
      %v1301 = vmax.f32 %v1118, 0.0
      %v1302 = vmax.f32 %v1121, 0.0
      %v1303 = vmax.f32 %v1124, 0.0
      %v1304 = vmax.f32 %v1127, 0.0
      %v1305 = vmax.f32 %v1130, 0.0
      %v1306 = vmax.f32 %v1133, 0.0
      %v1307 = vmax.f32 %v1136, 0.0
      %v1308 = vmax.f32 %v1139, 0.0
      %v1309 = vmax.f32 %v1142, 0.0
      %v1310 = vmax.f32 %v1145, 0.0
      %v1311 = vmax.f32 %v1148, 0.0
      %v1312 = vmax.f32 %v1151, 0.0
      %v1313 = vmax.f32 %v1154, 0.0
      %v1314 = vmax.f32 %v1157, 0.0
      %v1315 = vmax.f32 %v1160, 0.0
      %v1316 = vmax.f32 %v1163, 0.0
      %v1317 = vmax.f32 %v1166, 0.0
      %v1318 = vmax.f32 %v1169, 0.0
      %v1319 = vmax.f32 %v1172, 0.0
      %v1320 = vmax.f32 %v1175, 0.0
      %v1321 = vmax.f32 %v1178, 0.0
      %v1322 = vmax.f32 %v1181, 0.0
      %v1323 = vmax.f32 %v1184, 0.0
      %v1324 = vmax.f32 %v1187, 0.0
      %v1325 = vmax.f32 %v1190, 0.0
      %v1326 = vmax.f32 %v1193, 0.0
      %v1327 = vmax.f32 %v1196, 0.0
      %v1328 = vmax.f32 %v1199, 0.0
      %v1329 = vld [vmem:[%s3] sm:$0xff]
      %v1330 = vld [vmem:[%s3 + $0x8] sm:$0xff]
      %v1331 = vld [vmem:[%s3 + $0x10] sm:$0xff]
      %v1332 = vld [vmem:[%s3 + $0x18] sm:$0xff]
      %v1333 = vld [vmem:[%s4] sm:$0x1]
      %v1335 = vperm.slane %v1333, 0
      %vm1337 = vcmask 261120
      %v1339 = vsel %vm1337, %v1201, 0
      %v1342 = vsel %vm1337, %v1202, 0
      %v1345 = vsel %vm1337, %v1203, 0
      %v1348 = vsel %vm1337, %v1204, 0
      %v1351 = vsel %vm1337, %v1205, 0
      %v1354 = vsel %vm1337, %v1206, 0
      %v1357 = vsel %vm1337, %v1207, 0
      %v1360 = vsel %vm1337, %v1208, 0
      %v1363 = vsel %vm1337, %v1209, 0
      %v1366 = vsel %vm1337, %v1210, 0
      %v1369 = vsel %vm1337, %v1211, 0
      %v1372 = vsel %vm1337, %v1212, 0
      %v1375 = vsel %vm1337, %v1213, 0
      %v1378 = vsel %vm1337, %v1214, 0
      %v1381 = vsel %vm1337, %v1215, 0
      %v1384 = vsel %vm1337, %v1216, 0
      %v1387 = vsel %vm1337, %v1217, 0
      %v1390 = vsel %vm1337, %v1218, 0
      %v1393 = vsel %vm1337, %v1219, 0
      %v1396 = vsel %vm1337, %v1220, 0
      %v1399 = vsel %vm1337, %v1221, 0
      %v1402 = vsel %vm1337, %v1222, 0
      %v1405 = vsel %vm1337, %v1223, 0
      %v1408 = vsel %vm1337, %v1224, 0
      %v1411 = vsel %vm1337, %v1225, 0
      %v1414 = vsel %vm1337, %v1226, 0
      %v1417 = vsel %vm1337, %v1227, 0
      %v1420 = vsel %vm1337, %v1228, 0
      %v1423 = vsel %vm1337, %v1229, 0
      %v1426 = vsel %vm1337, %v1230, 0
      %v1429 = vsel %vm1337, %v1231, 0
      %v1432 = vsel %vm1337, %v1232, 0
      %v1435 = vsel %vm1337, %v1233, 0
      %v1438 = vsel %vm1337, %v1234, 0
      %v1441 = vsel %vm1337, %v1235, 0
      %v1444 = vsel %vm1337, %v1236, 0
      %v1447 = vsel %vm1337, %v1237, 0
      %v1450 = vsel %vm1337, %v1238, 0
      %v1453 = vsel %vm1337, %v1239, 0
      %v1456 = vsel %vm1337, %v1240, 0
      %v1459 = vsel %vm1337, %v1241, 0
      %v1462 = vsel %vm1337, %v1242, 0
      %v1465 = vsel %vm1337, %v1243, 0
      %v1468 = vsel %vm1337, %v1244, 0
      %v1471 = vsel %vm1337, %v1245, 0
      %v1474 = vsel %vm1337, %v1246, 0
      %v1477 = vsel %vm1337, %v1247, 0
      %v1480 = vsel %vm1337, %v1248, 0
      %v1483 = vsel %vm1337, %v1249, 0
      %v1486 = vsel %vm1337, %v1250, 0
      %v1489 = vsel %vm1337, %v1251, 0
      %v1492 = vsel %vm1337, %v1252, 0
      %v1495 = vsel %vm1337, %v1253, 0
      %v1498 = vsel %vm1337, %v1254, 0
      %v1501 = vsel %vm1337, %v1255, 0
      %v1504 = vsel %vm1337, %v1256, 0
      %v1507 = vsel %vm1337, %v1257, 0
      %v1510 = vsel %vm1337, %v1258, 0
      %v1513 = vsel %vm1337, %v1259, 0
      %v1516 = vsel %vm1337, %v1260, 0
      %v1519 = vsel %vm1337, %v1261, 0
      %v1522 = vsel %vm1337, %v1262, 0
      %v1525 = vsel %vm1337, %v1263, 0
      %v1528 = vsel %vm1337, %v1264, 0
      %v1531 = vsel %vm1337, %v1265, 0
      %v1534 = vsel %vm1337, %v1266, 0
      %v1537 = vsel %vm1337, %v1267, 0
      %v1540 = vsel %vm1337, %v1268, 0
      %v1543 = vsel %vm1337, %v1269, 0
      %v1546 = vsel %vm1337, %v1270, 0
      %v1549 = vsel %vm1337, %v1271, 0
      %v1552 = vsel %vm1337, %v1272, 0
      %v1555 = vsel %vm1337, %v1273, 0
      %v1558 = vsel %vm1337, %v1274, 0
      %v1561 = vsel %vm1337, %v1275, 0
      %v1564 = vsel %vm1337, %v1276, 0
      %v1567 = vsel %vm1337, %v1277, 0
      %v1570 = vsel %vm1337, %v1278, 0
      %v1573 = vsel %vm1337, %v1279, 0
      %v1576 = vsel %vm1337, %v1280, 0
      %v1579 = vsel %vm1337, %v1281, 0
      %v1582 = vsel %vm1337, %v1282, 0
      %v1585 = vsel %vm1337, %v1283, 0
      %v1588 = vsel %vm1337, %v1284, 0
      %v1591 = vsel %vm1337, %v1285, 0
      %v1594 = vsel %vm1337, %v1286, 0
      %v1597 = vsel %vm1337, %v1287, 0
      %v1600 = vsel %vm1337, %v1288, 0
      %v1603 = vsel %vm1337, %v1289, 0
      %v1606 = vsel %vm1337, %v1290, 0
      %v1609 = vsel %vm1337, %v1291, 0
      %v1612 = vsel %vm1337, %v1292, 0
      %v1615 = vsel %vm1337, %v1293, 0
      %v1618 = vsel %vm1337, %v1294, 0
      %v1621 = vsel %vm1337, %v1295, 0
      %v1624 = vsel %vm1337, %v1296, 0
      %v1627 = vsel %vm1337, %v1297, 0
      %v1630 = vsel %vm1337, %v1298, 0
      %v1633 = vsel %vm1337, %v1299, 0
      %v1636 = vsel %vm1337, %v1300, 0
      %v1639 = vsel %vm1337, %v1301, 0
      %v1642 = vsel %vm1337, %v1302, 0
      %v1645 = vsel %vm1337, %v1303, 0
      %v1648 = vsel %vm1337, %v1304, 0
      %v1651 = vsel %vm1337, %v1305, 0
      %v1654 = vsel %vm1337, %v1306, 0
      %v1657 = vsel %vm1337, %v1307, 0
      %v1660 = vsel %vm1337, %v1308, 0
      %v1663 = vsel %vm1337, %v1309, 0
      %v1666 = vsel %vm1337, %v1310, 0
      %v1669 = vsel %vm1337, %v1311, 0
      %v1672 = vsel %vm1337, %v1312, 0
      %v1675 = vsel %vm1337, %v1313, 0
      %v1678 = vsel %vm1337, %v1314, 0
      %v1681 = vsel %vm1337, %v1315, 0
      %v1684 = vsel %vm1337, %v1316, 0
      %v1687 = vsel %vm1337, %v1317, 0
      %v1690 = vsel %vm1337, %v1318, 0
      %v1693 = vsel %vm1337, %v1319, 0
      %v1696 = vsel %vm1337, %v1320, 0
      %v1699 = vsel %vm1337, %v1321, 0
      %v1702 = vsel %vm1337, %v1322, 0
      %v1705 = vsel %vm1337, %v1323, 0
      %v1708 = vsel %vm1337, %v1324, 0
      %v1711 = vsel %vm1337, %v1325, 0
      %v1714 = vsel %vm1337, %v1326, 0
      %v1717 = vsel %vm1337, %v1327, 0
      %v1720 = vsel %vm1337, %v1328, 0
      %1722 = vmatpush.msra.mxu0 0.0
      %1723 = vmatpush.msra.mxu0 0.0
      %1724 = vmatpush.msra.mxu0 0.0
      %1725 = vmatpush.msra.mxu0 0.0
      %1726 = vmatpush.msra.mxu0 0.0
      %1727 = vmatpush.msra.mxu0 0.0
      %1728 = vmatpush.msra.mxu0 0.0
      %1729 = vmatpush.msra.mxu0 0.0
      %1730 = vmatpush.msra.mxu0 0.0
      %1731 = vmatpush.msra.mxu0 0.0
      %1732 = vmatpush.msra.mxu0 0.0
      %1733 = vmatpush.msra.mxu0 0.0
      %1734 = vmatpush.msra.mxu0 %v1332
      %1735 = vmatpush.msra.mxu0 %v1331
      %1736 = vmatpush.msra.mxu0 %v1330
      %1737 = vmatpush.msra.mxu0 %v1329
      %1738 = vmatmul.f32.gmra.mxu0 %v1339
      %v1739 = vpop.f32.mrf.mxu0
      %v1740 = vadd.f32 %v1335, %v1739
      %1741 = vmatmul.f32.gmra.mxu0 %v1342
      %v1742 = vpop.f32.mrf.mxu0
      %v1743 = vadd.f32 %v1335, %v1742
      %1744 = vmatmul.f32.gmra.mxu0 %v1345
      %v1745 = vpop.f32.mrf.mxu0
      %v1746 = vadd.f32 %v1335, %v1745
      %1747 = vmatmul.f32.gmra.mxu0 %v1348
      %v1748 = vpop.f32.mrf.mxu0
      %v1749 = vadd.f32 %v1335, %v1748
      %1750 = vmatmul.f32.gmra.mxu0 %v1351
      %v1751 = vpop.f32.mrf.mxu0
      %v1752 = vadd.f32 %v1335, %v1751
      %1753 = vmatmul.f32.gmra.mxu0 %v1354
      %v1754 = vpop.f32.mrf.mxu0
      %v1755 = vadd.f32 %v1335, %v1754
      %1756 = vmatmul.f32.gmra.mxu0 %v1357
      %v1757 = vpop.f32.mrf.mxu0
      %v1758 = vadd.f32 %v1335, %v1757
      %1759 = vmatmul.f32.gmra.mxu0 %v1360
      %v1760 = vpop.f32.mrf.mxu0
      %v1761 = vadd.f32 %v1335, %v1760
      %1762 = vmatmul.f32.gmra.mxu0 %v1363
      %v1763 = vpop.f32.mrf.mxu0
      %v1764 = vadd.f32 %v1335, %v1763
      %1765 = vmatmul.f32.gmra.mxu0 %v1366
      %v1766 = vpop.f32.mrf.mxu0
      %v1767 = vadd.f32 %v1335, %v1766
      %1768 = vmatmul.f32.gmra.mxu0 %v1369
      %v1769 = vpop.f32.mrf.mxu0
      %v1770 = vadd.f32 %v1335, %v1769
      %1771 = vmatmul.f32.gmra.mxu0 %v1372
      %v1772 = vpop.f32.mrf.mxu0
      %v1773 = vadd.f32 %v1335, %v1772
      %1774 = vmatmul.f32.gmra.mxu0 %v1375
      %v1775 = vpop.f32.mrf.mxu0
      %v1776 = vadd.f32 %v1335, %v1775
      %1777 = vmatmul.f32.gmra.mxu0 %v1378
      %v1778 = vpop.f32.mrf.mxu0
      %v1779 = vadd.f32 %v1335, %v1778
      %1780 = vmatmul.f32.gmra.mxu0 %v1381
      %v1781 = vpop.f32.mrf.mxu0
      %v1782 = vadd.f32 %v1335, %v1781
      %1783 = vmatmul.f32.gmra.mxu0 %v1384
      %v1784 = vpop.f32.mrf.mxu0
      %v1785 = vadd.f32 %v1335, %v1784
      %1786 = vmatmul.f32.gmra.mxu0 %v1387
      %v1787 = vpop.f32.mrf.mxu0
      %v1788 = vadd.f32 %v1335, %v1787
      %1789 = vmatmul.f32.gmra.mxu0 %v1390
      %v1790 = vpop.f32.mrf.mxu0
      %v1791 = vadd.f32 %v1335, %v1790
      %1792 = vmatmul.f32.gmra.mxu0 %v1393
      %v1793 = vpop.f32.mrf.mxu0
      %v1794 = vadd.f32 %v1335, %v1793
      %1795 = vmatmul.f32.gmra.mxu0 %v1396
      %v1796 = vpop.f32.mrf.mxu0
      %v1797 = vadd.f32 %v1335, %v1796
      %1798 = vmatmul.f32.gmra.mxu0 %v1399
      %v1799 = vpop.f32.mrf.mxu0
      %v1800 = vadd.f32 %v1335, %v1799
      %1801 = vmatmul.f32.gmra.mxu0 %v1402
      %v1802 = vpop.f32.mrf.mxu0
      %v1803 = vadd.f32 %v1335, %v1802
      %1804 = vmatmul.f32.gmra.mxu0 %v1405
      %v1805 = vpop.f32.mrf.mxu0
      %v1806 = vadd.f32 %v1335, %v1805
      %1807 = vmatmul.f32.gmra.mxu0 %v1408
      %v1808 = vpop.f32.mrf.mxu0
      %v1809 = vadd.f32 %v1335, %v1808
      %1810 = vmatmul.f32.gmra.mxu0 %v1411
      %v1811 = vpop.f32.mrf.mxu0
      %v1812 = vadd.f32 %v1335, %v1811
      %1813 = vmatmul.f32.gmra.mxu0 %v1414
      %v1814 = vpop.f32.mrf.mxu0
      %v1815 = vadd.f32 %v1335, %v1814
      %1816 = vmatmul.f32.gmra.mxu0 %v1417
      %v1817 = vpop.f32.mrf.mxu0
      %v1818 = vadd.f32 %v1335, %v1817
      %1819 = vmatmul.f32.gmra.mxu0 %v1420
      %v1820 = vpop.f32.mrf.mxu0
      %v1821 = vadd.f32 %v1335, %v1820
      %1822 = vmatmul.f32.gmra.mxu0 %v1423
      %v1823 = vpop.f32.mrf.mxu0
      %v1824 = vadd.f32 %v1335, %v1823
      %1825 = vmatmul.f32.gmra.mxu0 %v1426
      %v1826 = vpop.f32.mrf.mxu0
      %v1827 = vadd.f32 %v1335, %v1826
      %1828 = vmatmul.f32.gmra.mxu0 %v1429
      %v1829 = vpop.f32.mrf.mxu0
      %v1830 = vadd.f32 %v1335, %v1829
      %1831 = vmatmul.f32.gmra.mxu0 %v1432
      %v1832 = vpop.f32.mrf.mxu0
      %v1833 = vadd.f32 %v1335, %v1832
      %1834 = vmatmul.f32.gmra.mxu0 %v1435
      %v1835 = vpop.f32.mrf.mxu0
      %v1836 = vadd.f32 %v1335, %v1835
      %1837 = vmatmul.f32.gmra.mxu0 %v1438
      %v1838 = vpop.f32.mrf.mxu0
      %v1839 = vadd.f32 %v1335, %v1838
      %1840 = vmatmul.f32.gmra.mxu0 %v1441
      %v1841 = vpop.f32.mrf.mxu0
      %v1842 = vadd.f32 %v1335, %v1841
      %1843 = vmatmul.f32.gmra.mxu0 %v1444
      %v1844 = vpop.f32.mrf.mxu0
      %v1845 = vadd.f32 %v1335, %v1844
      %1846 = vmatmul.f32.gmra.mxu0 %v1447
      %v1847 = vpop.f32.mrf.mxu0
      %v1848 = vadd.f32 %v1335, %v1847
      %1849 = vmatmul.f32.gmra.mxu0 %v1450
      %v1850 = vpop.f32.mrf.mxu0
      %v1851 = vadd.f32 %v1335, %v1850
      %1852 = vmatmul.f32.gmra.mxu0 %v1453
      %v1853 = vpop.f32.mrf.mxu0
      %v1854 = vadd.f32 %v1335, %v1853
      %1855 = vmatmul.f32.gmra.mxu0 %v1456
      %v1856 = vpop.f32.mrf.mxu0
      %v1857 = vadd.f32 %v1335, %v1856
      %1858 = vmatmul.f32.gmra.mxu0 %v1459
      %v1859 = vpop.f32.mrf.mxu0
      %v1860 = vadd.f32 %v1335, %v1859
      %1861 = vmatmul.f32.gmra.mxu0 %v1462
      %v1862 = vpop.f32.mrf.mxu0
      %v1863 = vadd.f32 %v1335, %v1862
      %1864 = vmatmul.f32.gmra.mxu0 %v1465
      %v1865 = vpop.f32.mrf.mxu0
      %v1866 = vadd.f32 %v1335, %v1865
      %1867 = vmatmul.f32.gmra.mxu0 %v1468
      %v1868 = vpop.f32.mrf.mxu0
      %v1869 = vadd.f32 %v1335, %v1868
      %1870 = vmatmul.f32.gmra.mxu0 %v1471
      %v1871 = vpop.f32.mrf.mxu0
      %v1872 = vadd.f32 %v1335, %v1871
      %1873 = vmatmul.f32.gmra.mxu0 %v1474
      %v1874 = vpop.f32.mrf.mxu0
      %v1875 = vadd.f32 %v1335, %v1874
      %1876 = vmatmul.f32.gmra.mxu0 %v1477
      %v1877 = vpop.f32.mrf.mxu0
      %v1878 = vadd.f32 %v1335, %v1877
      %1879 = vmatmul.f32.gmra.mxu0 %v1480
      %v1880 = vpop.f32.mrf.mxu0
      %v1881 = vadd.f32 %v1335, %v1880
      %1882 = vmatmul.f32.gmra.mxu0 %v1483
      %v1883 = vpop.f32.mrf.mxu0
      %v1884 = vadd.f32 %v1335, %v1883
      %1885 = vmatmul.f32.gmra.mxu0 %v1486
      %v1886 = vpop.f32.mrf.mxu0
      %v1887 = vadd.f32 %v1335, %v1886
      %1888 = vmatmul.f32.gmra.mxu0 %v1489
      %v1889 = vpop.f32.mrf.mxu0
      %v1890 = vadd.f32 %v1335, %v1889
      %1891 = vmatmul.f32.gmra.mxu0 %v1492
      %v1892 = vpop.f32.mrf.mxu0
      %v1893 = vadd.f32 %v1335, %v1892
      %1894 = vmatmul.f32.gmra.mxu0 %v1495
      %v1895 = vpop.f32.mrf.mxu0
      %v1896 = vadd.f32 %v1335, %v1895
      %1897 = vmatmul.f32.gmra.mxu0 %v1498
      %v1898 = vpop.f32.mrf.mxu0
      %v1899 = vadd.f32 %v1335, %v1898
      %1900 = vmatmul.f32.gmra.mxu0 %v1501
      %v1901 = vpop.f32.mrf.mxu0
      %v1902 = vadd.f32 %v1335, %v1901
      %1903 = vmatmul.f32.gmra.mxu0 %v1504
      %v1904 = vpop.f32.mrf.mxu0
      %v1905 = vadd.f32 %v1335, %v1904
      %1906 = vmatmul.f32.gmra.mxu0 %v1507
      %v1907 = vpop.f32.mrf.mxu0
      %v1908 = vadd.f32 %v1335, %v1907
      %1909 = vmatmul.f32.gmra.mxu0 %v1510
      %v1910 = vpop.f32.mrf.mxu0
      %v1911 = vadd.f32 %v1335, %v1910
      %1912 = vmatmul.f32.gmra.mxu0 %v1513
      %v1913 = vpop.f32.mrf.mxu0
      %v1914 = vadd.f32 %v1335, %v1913
      %1915 = vmatmul.f32.gmra.mxu0 %v1516
      %v1916 = vpop.f32.mrf.mxu0
      %v1917 = vadd.f32 %v1335, %v1916
      %1918 = vmatmul.f32.gmra.mxu0 %v1519
      %v1919 = vpop.f32.mrf.mxu0
      %v1920 = vadd.f32 %v1335, %v1919
      %1921 = vmatmul.f32.gmra.mxu0 %v1522
      %v1922 = vpop.f32.mrf.mxu0
      %v1923 = vadd.f32 %v1335, %v1922
      %1924 = vmatmul.f32.gmra.mxu0 %v1525
      %v1925 = vpop.f32.mrf.mxu0
      %v1926 = vadd.f32 %v1335, %v1925
      %1927 = vmatmul.f32.gmra.mxu0 %v1528
      %v1928 = vpop.f32.mrf.mxu0
      %v1929 = vadd.f32 %v1335, %v1928
      %1930 = vmatmul.f32.gmra.mxu0 %v1531
      %v1931 = vpop.f32.mrf.mxu0
      %v1932 = vadd.f32 %v1335, %v1931
      %1933 = vmatmul.f32.gmra.mxu0 %v1534
      %v1934 = vpop.f32.mrf.mxu0
      %v1935 = vadd.f32 %v1335, %v1934
      %1936 = vmatmul.f32.gmra.mxu0 %v1537
      %v1937 = vpop.f32.mrf.mxu0
      %v1938 = vadd.f32 %v1335, %v1937
      %1939 = vmatmul.f32.gmra.mxu0 %v1540
      %v1940 = vpop.f32.mrf.mxu0
      %v1941 = vadd.f32 %v1335, %v1940
      %1942 = vmatmul.f32.gmra.mxu0 %v1543
      %v1943 = vpop.f32.mrf.mxu0
      %v1944 = vadd.f32 %v1335, %v1943
      %1945 = vmatmul.f32.gmra.mxu0 %v1546
      %v1946 = vpop.f32.mrf.mxu0
      %v1947 = vadd.f32 %v1335, %v1946
      %1948 = vmatmul.f32.gmra.mxu0 %v1549
      %v1949 = vpop.f32.mrf.mxu0
      %v1950 = vadd.f32 %v1335, %v1949
      %1951 = vmatmul.f32.gmra.mxu0 %v1552
      %v1952 = vpop.f32.mrf.mxu0
      %v1953 = vadd.f32 %v1335, %v1952
      %1954 = vmatmul.f32.gmra.mxu0 %v1555
      %v1955 = vpop.f32.mrf.mxu0
      %v1956 = vadd.f32 %v1335, %v1955
      %1957 = vmatmul.f32.gmra.mxu0 %v1558
      %v1958 = vpop.f32.mrf.mxu0
      %v1959 = vadd.f32 %v1335, %v1958
      %1960 = vmatmul.f32.gmra.mxu0 %v1561
      %v1961 = vpop.f32.mrf.mxu0
      %v1962 = vadd.f32 %v1335, %v1961
      %1963 = vmatmul.f32.gmra.mxu0 %v1564
      %v1964 = vpop.f32.mrf.mxu0
      %v1965 = vadd.f32 %v1335, %v1964
      %1966 = vmatmul.f32.gmra.mxu0 %v1567
      %v1967 = vpop.f32.mrf.mxu0
      %v1968 = vadd.f32 %v1335, %v1967
      %1969 = vmatmul.f32.gmra.mxu0 %v1570
      %v1970 = vpop.f32.mrf.mxu0
      %v1971 = vadd.f32 %v1335, %v1970
      %1972 = vmatmul.f32.gmra.mxu0 %v1573
      %v1973 = vpop.f32.mrf.mxu0
      %v1974 = vadd.f32 %v1335, %v1973
      %1975 = vmatmul.f32.gmra.mxu0 %v1576
      %v1976 = vpop.f32.mrf.mxu0
      %v1977 = vadd.f32 %v1335, %v1976
      %1978 = vmatmul.f32.gmra.mxu0 %v1579
      %v1979 = vpop.f32.mrf.mxu0
      %v1980 = vadd.f32 %v1335, %v1979
      %1981 = vmatmul.f32.gmra.mxu0 %v1582
      %v1982 = vpop.f32.mrf.mxu0
      %v1983 = vadd.f32 %v1335, %v1982
      %1984 = vmatmul.f32.gmra.mxu0 %v1585
      %v1985 = vpop.f32.mrf.mxu0
      %v1986 = vadd.f32 %v1335, %v1985
      %1987 = vmatmul.f32.gmra.mxu0 %v1588
      %v1988 = vpop.f32.mrf.mxu0
      %v1989 = vadd.f32 %v1335, %v1988
      %1990 = vmatmul.f32.gmra.mxu0 %v1591
      %v1991 = vpop.f32.mrf.mxu0
      %v1992 = vadd.f32 %v1335, %v1991
      %1993 = vmatmul.f32.gmra.mxu0 %v1594
      %v1994 = vpop.f32.mrf.mxu0
      %v1995 = vadd.f32 %v1335, %v1994
      %1996 = vmatmul.f32.gmra.mxu0 %v1597
      %v1997 = vpop.f32.mrf.mxu0
      %v1998 = vadd.f32 %v1335, %v1997
      %1999 = vmatmul.f32.gmra.mxu0 %v1600
      %v2000 = vpop.f32.mrf.mxu0
      %v2001 = vadd.f32 %v1335, %v2000
      %2002 = vmatmul.f32.gmra.mxu0 %v1603
      %v2003 = vpop.f32.mrf.mxu0
      %v2004 = vadd.f32 %v1335, %v2003
      %2005 = vmatmul.f32.gmra.mxu0 %v1606
      %v2006 = vpop.f32.mrf.mxu0
      %v2007 = vadd.f32 %v1335, %v2006
      %2008 = vmatmul.f32.gmra.mxu0 %v1609
      %v2009 = vpop.f32.mrf.mxu0
      %v2010 = vadd.f32 %v1335, %v2009
      %2011 = vmatmul.f32.gmra.mxu0 %v1612
      %v2012 = vpop.f32.mrf.mxu0
      %v2013 = vadd.f32 %v1335, %v2012
      %2014 = vmatmul.f32.gmra.mxu0 %v1615
      %v2015 = vpop.f32.mrf.mxu0
      %v2016 = vadd.f32 %v1335, %v2015
      %2017 = vmatmul.f32.gmra.mxu0 %v1618
      %v2018 = vpop.f32.mrf.mxu0
      %v2019 = vadd.f32 %v1335, %v2018
      %2020 = vmatmul.f32.gmra.mxu0 %v1621
      %v2021 = vpop.f32.mrf.mxu0
      %v2022 = vadd.f32 %v1335, %v2021
      %2023 = vmatmul.f32.gmra.mxu0 %v1624
      %v2024 = vpop.f32.mrf.mxu0
      %v2025 = vadd.f32 %v1335, %v2024
      %2026 = vmatmul.f32.gmra.mxu0 %v1627
      %v2027 = vpop.f32.mrf.mxu0
      %v2028 = vadd.f32 %v1335, %v2027
      %2029 = vmatmul.f32.gmra.mxu0 %v1630
      %v2030 = vpop.f32.mrf.mxu0
      %v2031 = vadd.f32 %v1335, %v2030
      %2032 = vmatmul.f32.gmra.mxu0 %v1633
      %v2033 = vpop.f32.mrf.mxu0
      %v2034 = vadd.f32 %v1335, %v2033
      %2035 = vmatmul.f32.gmra.mxu0 %v1636
      %v2036 = vpop.f32.mrf.mxu0
      %v2037 = vadd.f32 %v1335, %v2036
      %2038 = vmatmul.f32.gmra.mxu0 %v1639
      %v2039 = vpop.f32.mrf.mxu0
      %v2040 = vadd.f32 %v1335, %v2039
      %2041 = vmatmul.f32.gmra.mxu0 %v1642
      %v2042 = vpop.f32.mrf.mxu0
      %v2043 = vadd.f32 %v1335, %v2042
      %2044 = vmatmul.f32.gmra.mxu0 %v1645
      %v2045 = vpop.f32.mrf.mxu0
      %v2046 = vadd.f32 %v1335, %v2045
      %2047 = vmatmul.f32.gmra.mxu0 %v1648
      %v2048 = vpop.f32.mrf.mxu0
      %v2049 = vadd.f32 %v1335, %v2048
      %2050 = vmatmul.f32.gmra.mxu0 %v1651
      %v2051 = vpop.f32.mrf.mxu0
      %v2052 = vadd.f32 %v1335, %v2051
      %2053 = vmatmul.f32.gmra.mxu0 %v1654
      %v2054 = vpop.f32.mrf.mxu0
      %v2055 = vadd.f32 %v1335, %v2054
      %2056 = vmatmul.f32.gmra.mxu0 %v1657
      %v2057 = vpop.f32.mrf.mxu0
      %v2058 = vadd.f32 %v1335, %v2057
      %2059 = vmatmul.f32.gmra.mxu0 %v1660
      %v2060 = vpop.f32.mrf.mxu0
      %v2061 = vadd.f32 %v1335, %v2060
      %2062 = vmatmul.f32.gmra.mxu0 %v1663
      %v2063 = vpop.f32.mrf.mxu0
      %v2064 = vadd.f32 %v1335, %v2063
      %2065 = vmatmul.f32.gmra.mxu0 %v1666
      %v2066 = vpop.f32.mrf.mxu0
      %v2067 = vadd.f32 %v1335, %v2066
      %2068 = vmatmul.f32.gmra.mxu0 %v1669
      %v2069 = vpop.f32.mrf.mxu0
      %v2070 = vadd.f32 %v1335, %v2069
      %2071 = vmatmul.f32.gmra.mxu0 %v1672
      %v2072 = vpop.f32.mrf.mxu0
      %v2073 = vadd.f32 %v1335, %v2072
      %2074 = vmatmul.f32.gmra.mxu0 %v1675
      %v2075 = vpop.f32.mrf.mxu0
      %v2076 = vadd.f32 %v1335, %v2075
      %2077 = vmatmul.f32.gmra.mxu0 %v1678
      %v2078 = vpop.f32.mrf.mxu0
      %v2079 = vadd.f32 %v1335, %v2078
      %2080 = vmatmul.f32.gmra.mxu0 %v1681
      %v2081 = vpop.f32.mrf.mxu0
      %v2082 = vadd.f32 %v1335, %v2081
      %2083 = vmatmul.f32.gmra.mxu0 %v1684
      %v2084 = vpop.f32.mrf.mxu0
      %v2085 = vadd.f32 %v1335, %v2084
      %2086 = vmatmul.f32.gmra.mxu0 %v1687
      %v2087 = vpop.f32.mrf.mxu0
      %v2088 = vadd.f32 %v1335, %v2087
      %2089 = vmatmul.f32.gmra.mxu0 %v1690
      %v2090 = vpop.f32.mrf.mxu0
      %v2091 = vadd.f32 %v1335, %v2090
      %2092 = vmatmul.f32.gmra.mxu0 %v1693
      %v2093 = vpop.f32.mrf.mxu0
      %v2094 = vadd.f32 %v1335, %v2093
      %2095 = vmatmul.f32.gmra.mxu0 %v1696
      %v2096 = vpop.f32.mrf.mxu0
      %v2097 = vadd.f32 %v1335, %v2096
      %2098 = vmatmul.f32.gmra.mxu0 %v1699
      %v2099 = vpop.f32.mrf.mxu0
      %v2100 = vadd.f32 %v1335, %v2099
      %2101 = vmatmul.f32.gmra.mxu0 %v1702
      %v2102 = vpop.f32.mrf.mxu0
      %v2103 = vadd.f32 %v1335, %v2102
      %2104 = vmatmul.f32.gmra.mxu0 %v1705
      %v2105 = vpop.f32.mrf.mxu0
      %v2106 = vadd.f32 %v1335, %v2105
      %2107 = vmatmul.f32.gmra.mxu0 %v1708
      %v2108 = vpop.f32.mrf.mxu0
      %v2109 = vadd.f32 %v1335, %v2108
      %2110 = vmatmul.f32.gmra.mxu0 %v1711
      %v2111 = vpop.f32.mrf.mxu0
      %v2112 = vadd.f32 %v1335, %v2111
      %2113 = vmatmul.f32.gmra.mxu0 %v1714
      %v2114 = vpop.f32.mrf.mxu0
      %v2115 = vadd.f32 %v1335, %v2114
      %2116 = vmatmul.f32.gmra.mxu0 %v1717
      %v2117 = vpop.f32.mrf.mxu0
      %v2118 = vadd.f32 %v1335, %v2117
      %2119 = vmatmul.f32.gmra.mxu0 %v1720
      %v2120 = vpop.f32.mrf.mxu0
      %v2121 = vadd.f32 %v1335, %v2120
      %2122 = vdwg.mxu0
      %v2123 = vmax.f32 %v1740, 0.0
      %v2124 = vmax.f32 %v1743, 0.0
      %v2125 = vmax.f32 %v1746, 0.0
      %v2126 = vmax.f32 %v1749, 0.0
      %v2127 = vmax.f32 %v1752, 0.0
      %v2128 = vmax.f32 %v1755, 0.0
      %v2129 = vmax.f32 %v1758, 0.0
      %v2130 = vmax.f32 %v1761, 0.0
      %v2131 = vmax.f32 %v1764, 0.0
      %v2132 = vmax.f32 %v1767, 0.0
      %v2133 = vmax.f32 %v1770, 0.0
      %v2134 = vmax.f32 %v1773, 0.0
      %v2135 = vmax.f32 %v1776, 0.0
      %v2136 = vmax.f32 %v1779, 0.0
      %v2137 = vmax.f32 %v1782, 0.0
      %v2138 = vmax.f32 %v1785, 0.0
      %v2139 = vmax.f32 %v1788, 0.0
      %v2140 = vmax.f32 %v1791, 0.0
      %v2141 = vmax.f32 %v1794, 0.0
      %v2142 = vmax.f32 %v1797, 0.0
      %v2143 = vmax.f32 %v1800, 0.0
      %v2144 = vmax.f32 %v1803, 0.0
      %v2145 = vmax.f32 %v1806, 0.0
      %v2146 = vmax.f32 %v1809, 0.0
      %v2147 = vmax.f32 %v1812, 0.0
      %v2148 = vmax.f32 %v1815, 0.0
      %v2149 = vmax.f32 %v1818, 0.0
      %v2150 = vmax.f32 %v1821, 0.0
      %v2151 = vmax.f32 %v1824, 0.0
      %v2152 = vmax.f32 %v1827, 0.0
      %v2153 = vmax.f32 %v1830, 0.0
      %v2154 = vmax.f32 %v1833, 0.0
      %v2155 = vmax.f32 %v1836, 0.0
      %v2156 = vmax.f32 %v1839, 0.0
      %v2157 = vmax.f32 %v1842, 0.0
      %v2158 = vmax.f32 %v1845, 0.0
      %v2159 = vmax.f32 %v1848, 0.0
      %v2160 = vmax.f32 %v1851, 0.0
      %v2161 = vmax.f32 %v1854, 0.0
      %v2162 = vmax.f32 %v1857, 0.0
      %v2163 = vmax.f32 %v1860, 0.0
      %v2164 = vmax.f32 %v1863, 0.0
      %v2165 = vmax.f32 %v1866, 0.0
      %v2166 = vmax.f32 %v1869, 0.0
      %v2167 = vmax.f32 %v1872, 0.0
      %v2168 = vmax.f32 %v1875, 0.0
      %v2169 = vmax.f32 %v1878, 0.0
      %v2170 = vmax.f32 %v1881, 0.0
      %v2171 = vmax.f32 %v1884, 0.0
      %v2172 = vmax.f32 %v1887, 0.0
      %v2173 = vmax.f32 %v1890, 0.0
      %v2174 = vmax.f32 %v1893, 0.0
      %v2175 = vmax.f32 %v1896, 0.0
      %v2176 = vmax.f32 %v1899, 0.0
      %v2177 = vmax.f32 %v1902, 0.0
      %v2178 = vmax.f32 %v1905, 0.0
      %v2179 = vmax.f32 %v1908, 0.0
      %v2180 = vmax.f32 %v1911, 0.0
      %v2181 = vmax.f32 %v1914, 0.0
      %v2182 = vmax.f32 %v1917, 0.0
      %v2183 = vmax.f32 %v1920, 0.0
      %v2184 = vmax.f32 %v1923, 0.0
      %v2185 = vmax.f32 %v1926, 0.0
      %v2186 = vmax.f32 %v1929, 0.0
      %v2187 = vmax.f32 %v1932, 0.0
      %v2188 = vmax.f32 %v1935, 0.0
      %v2189 = vmax.f32 %v1938, 0.0
      %v2190 = vmax.f32 %v1941, 0.0
      %v2191 = vmax.f32 %v1944, 0.0
      %v2192 = vmax.f32 %v1947, 0.0
      %v2193 = vmax.f32 %v1950, 0.0
      %v2194 = vmax.f32 %v1953, 0.0
      %v2195 = vmax.f32 %v1956, 0.0
      %v2196 = vmax.f32 %v1959, 0.0
      %v2197 = vmax.f32 %v1962, 0.0
      %v2198 = vmax.f32 %v1965, 0.0
      %v2199 = vmax.f32 %v1968, 0.0
      %v2200 = vmax.f32 %v1971, 0.0
      %v2201 = vmax.f32 %v1974, 0.0
      %v2202 = vmax.f32 %v1977, 0.0
      %v2203 = vmax.f32 %v1980, 0.0
      %v2204 = vmax.f32 %v1983, 0.0
      %v2205 = vmax.f32 %v1986, 0.0
      %v2206 = vmax.f32 %v1989, 0.0
      %v2207 = vmax.f32 %v1992, 0.0
      %v2208 = vmax.f32 %v1995, 0.0
      %v2209 = vmax.f32 %v1998, 0.0
      %v2210 = vmax.f32 %v2001, 0.0
      %v2211 = vmax.f32 %v2004, 0.0
      %v2212 = vmax.f32 %v2007, 0.0
      %v2213 = vmax.f32 %v2010, 0.0
      %v2214 = vmax.f32 %v2013, 0.0
      %v2215 = vmax.f32 %v2016, 0.0
      %v2216 = vmax.f32 %v2019, 0.0
      %v2217 = vmax.f32 %v2022, 0.0
      %v2218 = vmax.f32 %v2025, 0.0
      %v2219 = vmax.f32 %v2028, 0.0
      %v2220 = vmax.f32 %v2031, 0.0
      %v2221 = vmax.f32 %v2034, 0.0
      %v2222 = vmax.f32 %v2037, 0.0
      %v2223 = vmax.f32 %v2040, 0.0
      %v2224 = vmax.f32 %v2043, 0.0
      %v2225 = vmax.f32 %v2046, 0.0
      %v2226 = vmax.f32 %v2049, 0.0
      %v2227 = vmax.f32 %v2052, 0.0
      %v2228 = vmax.f32 %v2055, 0.0
      %v2229 = vmax.f32 %v2058, 0.0
      %v2230 = vmax.f32 %v2061, 0.0
      %v2231 = vmax.f32 %v2064, 0.0
      %v2232 = vmax.f32 %v2067, 0.0
      %v2233 = vmax.f32 %v2070, 0.0
      %v2234 = vmax.f32 %v2073, 0.0
      %v2235 = vmax.f32 %v2076, 0.0
      %v2236 = vmax.f32 %v2079, 0.0
      %v2237 = vmax.f32 %v2082, 0.0
      %v2238 = vmax.f32 %v2085, 0.0
      %v2239 = vmax.f32 %v2088, 0.0
      %v2240 = vmax.f32 %v2091, 0.0
      %v2241 = vmax.f32 %v2094, 0.0
      %v2242 = vmax.f32 %v2097, 0.0
      %v2243 = vmax.f32 %v2100, 0.0
      %v2244 = vmax.f32 %v2103, 0.0
      %v2245 = vmax.f32 %v2106, 0.0
      %v2246 = vmax.f32 %v2109, 0.0
      %v2247 = vmax.f32 %v2112, 0.0
      %v2248 = vmax.f32 %v2115, 0.0
      %v2249 = vmax.f32 %v2118, 0.0
      %v2250 = vmax.f32 %v2121, 0.0
      %v2251 = vld [vmem:[%s5] sm:$0xff]
      %v2252 = vld [vmem:[%s5 + $0x8] sm:$0xff]
      %v2253 = vld [vmem:[%s5 + $0x10] sm:$0xff]
      %v2254 = vld [vmem:[%s5 + $0x18] sm:$0xff]
      %v2255 = vld [vmem:[%s6] sm:$0x1]
      %v2257 = vperm.slane %v2255, 0
      %v2260 = vsel %vm1337, %v2123, 0
      %v2263 = vsel %vm1337, %v2124, 0
      %v2266 = vsel %vm1337, %v2125, 0
      %v2269 = vsel %vm1337, %v2126, 0
      %v2272 = vsel %vm1337, %v2127, 0
      %v2275 = vsel %vm1337, %v2128, 0
      %v2278 = vsel %vm1337, %v2129, 0
      %v2281 = vsel %vm1337, %v2130, 0
      %v2284 = vsel %vm1337, %v2131, 0
      %v2287 = vsel %vm1337, %v2132, 0
      %v2290 = vsel %vm1337, %v2133, 0
      %v2293 = vsel %vm1337, %v2134, 0
      %v2296 = vsel %vm1337, %v2135, 0
      %v2299 = vsel %vm1337, %v2136, 0
      %v2302 = vsel %vm1337, %v2137, 0
      %v2305 = vsel %vm1337, %v2138, 0
      %v2308 = vsel %vm1337, %v2139, 0
      %v2311 = vsel %vm1337, %v2140, 0
      %v2314 = vsel %vm1337, %v2141, 0
      %v2317 = vsel %vm1337, %v2142, 0
      %v2320 = vsel %vm1337, %v2143, 0
      %v2323 = vsel %vm1337, %v2144, 0
      %v2326 = vsel %vm1337, %v2145, 0
      %v2329 = vsel %vm1337, %v2146, 0
      %v2332 = vsel %vm1337, %v2147, 0
      %v2335 = vsel %vm1337, %v2148, 0
      %v2338 = vsel %vm1337, %v2149, 0
      %v2341 = vsel %vm1337, %v2150, 0
      %v2344 = vsel %vm1337, %v2151, 0
      %v2347 = vsel %vm1337, %v2152, 0
      %v2350 = vsel %vm1337, %v2153, 0
      %v2353 = vsel %vm1337, %v2154, 0
      %v2356 = vsel %vm1337, %v2155, 0
      %v2359 = vsel %vm1337, %v2156, 0
      %v2362 = vsel %vm1337, %v2157, 0
      %v2365 = vsel %vm1337, %v2158, 0
      %v2368 = vsel %vm1337, %v2159, 0
      %v2371 = vsel %vm1337, %v2160, 0
      %v2374 = vsel %vm1337, %v2161, 0
      %v2377 = vsel %vm1337, %v2162, 0
      %v2380 = vsel %vm1337, %v2163, 0
      %v2383 = vsel %vm1337, %v2164, 0
      %v2386 = vsel %vm1337, %v2165, 0
      %v2389 = vsel %vm1337, %v2166, 0
      %v2392 = vsel %vm1337, %v2167, 0
      %v2395 = vsel %vm1337, %v2168, 0
      %v2398 = vsel %vm1337, %v2169, 0
      %v2401 = vsel %vm1337, %v2170, 0
      %v2404 = vsel %vm1337, %v2171, 0
      %v2407 = vsel %vm1337, %v2172, 0
      %v2410 = vsel %vm1337, %v2173, 0
      %v2413 = vsel %vm1337, %v2174, 0
      %v2416 = vsel %vm1337, %v2175, 0
      %v2419 = vsel %vm1337, %v2176, 0
      %v2422 = vsel %vm1337, %v2177, 0
      %v2425 = vsel %vm1337, %v2178, 0
      %v2428 = vsel %vm1337, %v2179, 0
      %v2431 = vsel %vm1337, %v2180, 0
      %v2434 = vsel %vm1337, %v2181, 0
      %v2437 = vsel %vm1337, %v2182, 0
      %v2440 = vsel %vm1337, %v2183, 0
      %v2443 = vsel %vm1337, %v2184, 0
      %v2446 = vsel %vm1337, %v2185, 0
      %v2449 = vsel %vm1337, %v2186, 0
      %v2452 = vsel %vm1337, %v2187, 0
      %v2455 = vsel %vm1337, %v2188, 0
      %v2458 = vsel %vm1337, %v2189, 0
      %v2461 = vsel %vm1337, %v2190, 0
      %v2464 = vsel %vm1337, %v2191, 0
      %v2467 = vsel %vm1337, %v2192, 0
      %v2470 = vsel %vm1337, %v2193, 0
      %v2473 = vsel %vm1337, %v2194, 0
      %v2476 = vsel %vm1337, %v2195, 0
      %v2479 = vsel %vm1337, %v2196, 0
      %v2482 = vsel %vm1337, %v2197, 0
      %v2485 = vsel %vm1337, %v2198, 0
      %v2488 = vsel %vm1337, %v2199, 0
      %v2491 = vsel %vm1337, %v2200, 0
      %v2494 = vsel %vm1337, %v2201, 0
      %v2497 = vsel %vm1337, %v2202, 0
      %v2500 = vsel %vm1337, %v2203, 0
      %v2503 = vsel %vm1337, %v2204, 0
      %v2506 = vsel %vm1337, %v2205, 0
      %v2509 = vsel %vm1337, %v2206, 0
      %v2512 = vsel %vm1337, %v2207, 0
      %v2515 = vsel %vm1337, %v2208, 0
      %v2518 = vsel %vm1337, %v2209, 0
      %v2521 = vsel %vm1337, %v2210, 0
      %v2524 = vsel %vm1337, %v2211, 0
      %v2527 = vsel %vm1337, %v2212, 0
      %v2530 = vsel %vm1337, %v2213, 0
      %v2533 = vsel %vm1337, %v2214, 0
      %v2536 = vsel %vm1337, %v2215, 0
      %v2539 = vsel %vm1337, %v2216, 0
      %v2542 = vsel %vm1337, %v2217, 0
      %v2545 = vsel %vm1337, %v2218, 0
      %v2548 = vsel %vm1337, %v2219, 0
      %v2551 = vsel %vm1337, %v2220, 0
      %v2554 = vsel %vm1337, %v2221, 0
      %v2557 = vsel %vm1337, %v2222, 0
      %v2560 = vsel %vm1337, %v2223, 0
      %v2563 = vsel %vm1337, %v2224, 0
      %v2566 = vsel %vm1337, %v2225, 0
      %v2569 = vsel %vm1337, %v2226, 0
      %v2572 = vsel %vm1337, %v2227, 0
      %v2575 = vsel %vm1337, %v2228, 0
      %v2578 = vsel %vm1337, %v2229, 0
      %v2581 = vsel %vm1337, %v2230, 0
      %v2584 = vsel %vm1337, %v2231, 0
      %v2587 = vsel %vm1337, %v2232, 0
      %v2590 = vsel %vm1337, %v2233, 0
      %v2593 = vsel %vm1337, %v2234, 0
      %v2596 = vsel %vm1337, %v2235, 0
      %v2599 = vsel %vm1337, %v2236, 0
      %v2602 = vsel %vm1337, %v2237, 0
      %v2605 = vsel %vm1337, %v2238, 0
      %v2608 = vsel %vm1337, %v2239, 0
      %v2611 = vsel %vm1337, %v2240, 0
      %v2614 = vsel %vm1337, %v2241, 0
      %v2617 = vsel %vm1337, %v2242, 0
      %v2620 = vsel %vm1337, %v2243, 0
      %v2623 = vsel %vm1337, %v2244, 0
      %v2626 = vsel %vm1337, %v2245, 0
      %v2629 = vsel %vm1337, %v2246, 0
      %v2632 = vsel %vm1337, %v2247, 0
      %v2635 = vsel %vm1337, %v2248, 0
      %v2638 = vsel %vm1337, %v2249, 0
      %v2641 = vsel %vm1337, %v2250, 0
      %2643 = vmatpush.msra.mxu0 0.0
      %2644 = vmatpush.msra.mxu0 0.0
      %2645 = vmatpush.msra.mxu0 0.0
      %2646 = vmatpush.msra.mxu0 0.0
      %2647 = vmatpush.msra.mxu0 0.0
      %2648 = vmatpush.msra.mxu0 0.0
      %2649 = vmatpush.msra.mxu0 0.0
      %2650 = vmatpush.msra.mxu0 0.0
      %2651 = vmatpush.msra.mxu0 0.0
      %2652 = vmatpush.msra.mxu0 0.0
      %2653 = vmatpush.msra.mxu0 0.0
      %2654 = vmatpush.msra.mxu0 0.0
      %2655 = vmatpush.msra.mxu0 %v2254
      %2656 = vmatpush.msra.mxu0 %v2253
      %2657 = vmatpush.msra.mxu0 %v2252
      %2658 = vmatpush.msra.mxu0 %v2251
      %2659 = vmatmul.f32.gmra.mxu0 %v2260
      %v2660 = vpop.f32.mrf.mxu0
      %v2661 = vadd.f32 %v2257, %v2660
      %2662 = vmatmul.f32.gmra.mxu0 %v2263
      %v2663 = vpop.f32.mrf.mxu0
      %v2664 = vadd.f32 %v2257, %v2663
      %2665 = vmatmul.f32.gmra.mxu0 %v2266
      %v2666 = vpop.f32.mrf.mxu0
      %v2667 = vadd.f32 %v2257, %v2666
      %2668 = vmatmul.f32.gmra.mxu0 %v2269
      %v2669 = vpop.f32.mrf.mxu0
      %v2670 = vadd.f32 %v2257, %v2669
      %2671 = vmatmul.f32.gmra.mxu0 %v2272
      %v2672 = vpop.f32.mrf.mxu0
      %v2673 = vadd.f32 %v2257, %v2672
      %2674 = vmatmul.f32.gmra.mxu0 %v2275
      %v2675 = vpop.f32.mrf.mxu0
      %v2676 = vadd.f32 %v2257, %v2675
      %2677 = vmatmul.f32.gmra.mxu0 %v2278
      %v2678 = vpop.f32.mrf.mxu0
      %v2679 = vadd.f32 %v2257, %v2678
      %2680 = vmatmul.f32.gmra.mxu0 %v2281
      %v2681 = vpop.f32.mrf.mxu0
      %v2682 = vadd.f32 %v2257, %v2681
      %2683 = vmatmul.f32.gmra.mxu0 %v2284
      %v2684 = vpop.f32.mrf.mxu0
      %v2685 = vadd.f32 %v2257, %v2684
      %2686 = vmatmul.f32.gmra.mxu0 %v2287
      %v2687 = vpop.f32.mrf.mxu0
      %v2688 = vadd.f32 %v2257, %v2687
      %2689 = vmatmul.f32.gmra.mxu0 %v2290
      %v2690 = vpop.f32.mrf.mxu0
      %v2691 = vadd.f32 %v2257, %v2690
      %2692 = vmatmul.f32.gmra.mxu0 %v2293
      %v2693 = vpop.f32.mrf.mxu0
      %v2694 = vadd.f32 %v2257, %v2693
      %2695 = vmatmul.f32.gmra.mxu0 %v2296
      %v2696 = vpop.f32.mrf.mxu0
      %v2697 = vadd.f32 %v2257, %v2696
      %2698 = vmatmul.f32.gmra.mxu0 %v2299
      %v2699 = vpop.f32.mrf.mxu0
      %v2700 = vadd.f32 %v2257, %v2699
      %2701 = vmatmul.f32.gmra.mxu0 %v2302
      %v2702 = vpop.f32.mrf.mxu0
      %v2703 = vadd.f32 %v2257, %v2702
      %2704 = vmatmul.f32.gmra.mxu0 %v2305
      %v2705 = vpop.f32.mrf.mxu0
      %v2706 = vadd.f32 %v2257, %v2705
      %2707 = vmatmul.f32.gmra.mxu0 %v2308
      %v2708 = vpop.f32.mrf.mxu0
      %v2709 = vadd.f32 %v2257, %v2708
      %2710 = vmatmul.f32.gmra.mxu0 %v2311
      %v2711 = vpop.f32.mrf.mxu0
      %v2712 = vadd.f32 %v2257, %v2711
      %2713 = vmatmul.f32.gmra.mxu0 %v2314
      %v2714 = vpop.f32.mrf.mxu0
      %v2715 = vadd.f32 %v2257, %v2714
      %2716 = vmatmul.f32.gmra.mxu0 %v2317
      %v2717 = vpop.f32.mrf.mxu0
      %v2718 = vadd.f32 %v2257, %v2717
      %2719 = vmatmul.f32.gmra.mxu0 %v2320
      %v2720 = vpop.f32.mrf.mxu0
      %v2721 = vadd.f32 %v2257, %v2720
      %2722 = vmatmul.f32.gmra.mxu0 %v2323
      %v2723 = vpop.f32.mrf.mxu0
      %v2724 = vadd.f32 %v2257, %v2723
      %2725 = vmatmul.f32.gmra.mxu0 %v2326
      %v2726 = vpop.f32.mrf.mxu0
      %v2727 = vadd.f32 %v2257, %v2726
      %2728 = vmatmul.f32.gmra.mxu0 %v2329
      %v2729 = vpop.f32.mrf.mxu0
      %v2730 = vadd.f32 %v2257, %v2729
      %2731 = vmatmul.f32.gmra.mxu0 %v2332
      %v2732 = vpop.f32.mrf.mxu0
      %v2733 = vadd.f32 %v2257, %v2732
      %2734 = vmatmul.f32.gmra.mxu0 %v2335
      %v2735 = vpop.f32.mrf.mxu0
      %v2736 = vadd.f32 %v2257, %v2735
      %2737 = vmatmul.f32.gmra.mxu0 %v2338
      %v2738 = vpop.f32.mrf.mxu0
      %v2739 = vadd.f32 %v2257, %v2738
      %2740 = vmatmul.f32.gmra.mxu0 %v2341
      %v2741 = vpop.f32.mrf.mxu0
      %v2742 = vadd.f32 %v2257, %v2741
      %2743 = vmatmul.f32.gmra.mxu0 %v2344
      %v2744 = vpop.f32.mrf.mxu0
      %v2745 = vadd.f32 %v2257, %v2744
      %2746 = vmatmul.f32.gmra.mxu0 %v2347
      %v2747 = vpop.f32.mrf.mxu0
      %v2748 = vadd.f32 %v2257, %v2747
      %2749 = vmatmul.f32.gmra.mxu0 %v2350
      %v2750 = vpop.f32.mrf.mxu0
      %v2751 = vadd.f32 %v2257, %v2750
      %2752 = vmatmul.f32.gmra.mxu0 %v2353
      %v2753 = vpop.f32.mrf.mxu0
      %v2754 = vadd.f32 %v2257, %v2753
      %2755 = vmatmul.f32.gmra.mxu0 %v2356
      %v2756 = vpop.f32.mrf.mxu0
      %v2757 = vadd.f32 %v2257, %v2756
      %2758 = vmatmul.f32.gmra.mxu0 %v2359
      %v2759 = vpop.f32.mrf.mxu0
      %v2760 = vadd.f32 %v2257, %v2759
      %2761 = vmatmul.f32.gmra.mxu0 %v2362
      %v2762 = vpop.f32.mrf.mxu0
      %v2763 = vadd.f32 %v2257, %v2762
      %2764 = vmatmul.f32.gmra.mxu0 %v2365
      %v2765 = vpop.f32.mrf.mxu0
      %v2766 = vadd.f32 %v2257, %v2765
      %2767 = vmatmul.f32.gmra.mxu0 %v2368
      %v2768 = vpop.f32.mrf.mxu0
      %v2769 = vadd.f32 %v2257, %v2768
      %2770 = vmatmul.f32.gmra.mxu0 %v2371
      %v2771 = vpop.f32.mrf.mxu0
      %v2772 = vadd.f32 %v2257, %v2771
      %2773 = vmatmul.f32.gmra.mxu0 %v2374
      %v2774 = vpop.f32.mrf.mxu0
      %v2775 = vadd.f32 %v2257, %v2774
      %2776 = vmatmul.f32.gmra.mxu0 %v2377
      %v2777 = vpop.f32.mrf.mxu0
      %v2778 = vadd.f32 %v2257, %v2777
      %2779 = vmatmul.f32.gmra.mxu0 %v2380
      %v2780 = vpop.f32.mrf.mxu0
      %v2781 = vadd.f32 %v2257, %v2780
      %2782 = vmatmul.f32.gmra.mxu0 %v2383
      %v2783 = vpop.f32.mrf.mxu0
      %v2784 = vadd.f32 %v2257, %v2783
      %2785 = vmatmul.f32.gmra.mxu0 %v2386
      %v2786 = vpop.f32.mrf.mxu0
      %v2787 = vadd.f32 %v2257, %v2786
      %2788 = vmatmul.f32.gmra.mxu0 %v2389
      %v2789 = vpop.f32.mrf.mxu0
      %v2790 = vadd.f32 %v2257, %v2789
      %2791 = vmatmul.f32.gmra.mxu0 %v2392
      %v2792 = vpop.f32.mrf.mxu0
      %v2793 = vadd.f32 %v2257, %v2792
      %2794 = vmatmul.f32.gmra.mxu0 %v2395
      %v2795 = vpop.f32.mrf.mxu0
      %v2796 = vadd.f32 %v2257, %v2795
      %2797 = vmatmul.f32.gmra.mxu0 %v2398
      %v2798 = vpop.f32.mrf.mxu0
      %v2799 = vadd.f32 %v2257, %v2798
      %2800 = vmatmul.f32.gmra.mxu0 %v2401
      %v2801 = vpop.f32.mrf.mxu0
      %v2802 = vadd.f32 %v2257, %v2801
      %2803 = vmatmul.f32.gmra.mxu0 %v2404
      %v2804 = vpop.f32.mrf.mxu0
      %v2805 = vadd.f32 %v2257, %v2804
      %2806 = vmatmul.f32.gmra.mxu0 %v2407
      %v2807 = vpop.f32.mrf.mxu0
      %v2808 = vadd.f32 %v2257, %v2807
      %2809 = vmatmul.f32.gmra.mxu0 %v2410
      %v2810 = vpop.f32.mrf.mxu0
      %v2811 = vadd.f32 %v2257, %v2810
      %2812 = vmatmul.f32.gmra.mxu0 %v2413
      %v2813 = vpop.f32.mrf.mxu0
      %v2814 = vadd.f32 %v2257, %v2813
      %2815 = vmatmul.f32.gmra.mxu0 %v2416
      %v2816 = vpop.f32.mrf.mxu0
      %v2817 = vadd.f32 %v2257, %v2816
      %2818 = vmatmul.f32.gmra.mxu0 %v2419
      %v2819 = vpop.f32.mrf.mxu0
      %v2820 = vadd.f32 %v2257, %v2819
      %2821 = vmatmul.f32.gmra.mxu0 %v2422
      %v2822 = vpop.f32.mrf.mxu0
      %v2823 = vadd.f32 %v2257, %v2822
      %2824 = vmatmul.f32.gmra.mxu0 %v2425
      %v2825 = vpop.f32.mrf.mxu0
      %v2826 = vadd.f32 %v2257, %v2825
      %2827 = vmatmul.f32.gmra.mxu0 %v2428
      %v2828 = vpop.f32.mrf.mxu0
      %v2829 = vadd.f32 %v2257, %v2828
      %2830 = vmatmul.f32.gmra.mxu0 %v2431
      %v2831 = vpop.f32.mrf.mxu0
      %v2832 = vadd.f32 %v2257, %v2831
      %2833 = vmatmul.f32.gmra.mxu0 %v2434
      %v2834 = vpop.f32.mrf.mxu0
      %v2835 = vadd.f32 %v2257, %v2834
      %2836 = vmatmul.f32.gmra.mxu0 %v2437
      %v2837 = vpop.f32.mrf.mxu0
      %v2838 = vadd.f32 %v2257, %v2837
      %2839 = vmatmul.f32.gmra.mxu0 %v2440
      %v2840 = vpop.f32.mrf.mxu0
      %v2841 = vadd.f32 %v2257, %v2840
      %2842 = vmatmul.f32.gmra.mxu0 %v2443
      %v2843 = vpop.f32.mrf.mxu0
      %v2844 = vadd.f32 %v2257, %v2843
      %2845 = vmatmul.f32.gmra.mxu0 %v2446
      %v2846 = vpop.f32.mrf.mxu0
      %v2847 = vadd.f32 %v2257, %v2846
      %2848 = vmatmul.f32.gmra.mxu0 %v2449
      %v2849 = vpop.f32.mrf.mxu0
      %v2850 = vadd.f32 %v2257, %v2849
      %2851 = vmatmul.f32.gmra.mxu0 %v2452
      %v2852 = vpop.f32.mrf.mxu0
      %v2853 = vadd.f32 %v2257, %v2852
      %2854 = vmatmul.f32.gmra.mxu0 %v2455
      %v2855 = vpop.f32.mrf.mxu0
      %v2856 = vadd.f32 %v2257, %v2855
      %2857 = vmatmul.f32.gmra.mxu0 %v2458
      %v2858 = vpop.f32.mrf.mxu0
      %v2859 = vadd.f32 %v2257, %v2858
      %2860 = vmatmul.f32.gmra.mxu0 %v2461
      %v2861 = vpop.f32.mrf.mxu0
      %v2862 = vadd.f32 %v2257, %v2861
      %2863 = vmatmul.f32.gmra.mxu0 %v2464
      %v2864 = vpop.f32.mrf.mxu0
      %v2865 = vadd.f32 %v2257, %v2864
      %2866 = vmatmul.f32.gmra.mxu0 %v2467
      %v2867 = vpop.f32.mrf.mxu0
      %v2868 = vadd.f32 %v2257, %v2867
      %2869 = vmatmul.f32.gmra.mxu0 %v2470
      %v2870 = vpop.f32.mrf.mxu0
      %v2871 = vadd.f32 %v2257, %v2870
      %2872 = vmatmul.f32.gmra.mxu0 %v2473
      %v2873 = vpop.f32.mrf.mxu0
      %v2874 = vadd.f32 %v2257, %v2873
      %2875 = vmatmul.f32.gmra.mxu0 %v2476
      %v2876 = vpop.f32.mrf.mxu0
      %v2877 = vadd.f32 %v2257, %v2876
      %2878 = vmatmul.f32.gmra.mxu0 %v2479
      %v2879 = vpop.f32.mrf.mxu0
      %v2880 = vadd.f32 %v2257, %v2879
      %2881 = vmatmul.f32.gmra.mxu0 %v2482
      %v2882 = vpop.f32.mrf.mxu0
      %v2883 = vadd.f32 %v2257, %v2882
      %2884 = vmatmul.f32.gmra.mxu0 %v2485
      %v2885 = vpop.f32.mrf.mxu0
      %v2886 = vadd.f32 %v2257, %v2885
      %2887 = vmatmul.f32.gmra.mxu0 %v2488
      %v2888 = vpop.f32.mrf.mxu0
      %v2889 = vadd.f32 %v2257, %v2888
      %2890 = vmatmul.f32.gmra.mxu0 %v2491
      %v2891 = vpop.f32.mrf.mxu0
      %v2892 = vadd.f32 %v2257, %v2891
      %2893 = vmatmul.f32.gmra.mxu0 %v2494
      %v2894 = vpop.f32.mrf.mxu0
      %v2895 = vadd.f32 %v2257, %v2894
      %2896 = vmatmul.f32.gmra.mxu0 %v2497
      %v2897 = vpop.f32.mrf.mxu0
      %v2898 = vadd.f32 %v2257, %v2897
      %2899 = vmatmul.f32.gmra.mxu0 %v2500
      %v2900 = vpop.f32.mrf.mxu0
      %v2901 = vadd.f32 %v2257, %v2900
      %2902 = vmatmul.f32.gmra.mxu0 %v2503
      %v2903 = vpop.f32.mrf.mxu0
      %v2904 = vadd.f32 %v2257, %v2903
      %2905 = vmatmul.f32.gmra.mxu0 %v2506
      %v2906 = vpop.f32.mrf.mxu0
      %v2907 = vadd.f32 %v2257, %v2906
      %2908 = vmatmul.f32.gmra.mxu0 %v2509
      %v2909 = vpop.f32.mrf.mxu0
      %v2910 = vadd.f32 %v2257, %v2909
      %2911 = vmatmul.f32.gmra.mxu0 %v2512
      %v2912 = vpop.f32.mrf.mxu0
      %v2913 = vadd.f32 %v2257, %v2912
      %2914 = vmatmul.f32.gmra.mxu0 %v2515
      %v2915 = vpop.f32.mrf.mxu0
      %v2916 = vadd.f32 %v2257, %v2915
      %2917 = vmatmul.f32.gmra.mxu0 %v2518
      %v2918 = vpop.f32.mrf.mxu0
      %v2919 = vadd.f32 %v2257, %v2918
      %2920 = vmatmul.f32.gmra.mxu0 %v2521
      %v2921 = vpop.f32.mrf.mxu0
      %v2922 = vadd.f32 %v2257, %v2921
      %2923 = vmatmul.f32.gmra.mxu0 %v2524
      %v2924 = vpop.f32.mrf.mxu0
      %v2925 = vadd.f32 %v2257, %v2924
      %2926 = vmatmul.f32.gmra.mxu0 %v2527
      %v2927 = vpop.f32.mrf.mxu0
      %v2928 = vadd.f32 %v2257, %v2927
      %2929 = vmatmul.f32.gmra.mxu0 %v2530
      %v2930 = vpop.f32.mrf.mxu0
      %v2931 = vadd.f32 %v2257, %v2930
      %2932 = vmatmul.f32.gmra.mxu0 %v2533
      %v2933 = vpop.f32.mrf.mxu0
      %v2934 = vadd.f32 %v2257, %v2933
      %2935 = vmatmul.f32.gmra.mxu0 %v2536
      %v2936 = vpop.f32.mrf.mxu0
      %v2937 = vadd.f32 %v2257, %v2936
      %2938 = vmatmul.f32.gmra.mxu0 %v2539
      %v2939 = vpop.f32.mrf.mxu0
      %v2940 = vadd.f32 %v2257, %v2939
      %2941 = vmatmul.f32.gmra.mxu0 %v2542
      %v2942 = vpop.f32.mrf.mxu0
      %v2943 = vadd.f32 %v2257, %v2942
      %2944 = vmatmul.f32.gmra.mxu0 %v2545
      %v2945 = vpop.f32.mrf.mxu0
      %v2946 = vadd.f32 %v2257, %v2945
      %2947 = vmatmul.f32.gmra.mxu0 %v2548
      %v2948 = vpop.f32.mrf.mxu0
      %v2949 = vadd.f32 %v2257, %v2948
      %2950 = vmatmul.f32.gmra.mxu0 %v2551
      %v2951 = vpop.f32.mrf.mxu0
      %v2952 = vadd.f32 %v2257, %v2951
      %2953 = vmatmul.f32.gmra.mxu0 %v2554
      %v2954 = vpop.f32.mrf.mxu0
      %v2955 = vadd.f32 %v2257, %v2954
      %2956 = vmatmul.f32.gmra.mxu0 %v2557
      %v2957 = vpop.f32.mrf.mxu0
      %v2958 = vadd.f32 %v2257, %v2957
      %2959 = vmatmul.f32.gmra.mxu0 %v2560
      %v2960 = vpop.f32.mrf.mxu0
      %v2961 = vadd.f32 %v2257, %v2960
      %2962 = vmatmul.f32.gmra.mxu0 %v2563
      %v2963 = vpop.f32.mrf.mxu0
      %v2964 = vadd.f32 %v2257, %v2963
      %2965 = vmatmul.f32.gmra.mxu0 %v2566
      %v2966 = vpop.f32.mrf.mxu0
      %v2967 = vadd.f32 %v2257, %v2966
      %2968 = vmatmul.f32.gmra.mxu0 %v2569
      %v2969 = vpop.f32.mrf.mxu0
      %v2970 = vadd.f32 %v2257, %v2969
      %2971 = vmatmul.f32.gmra.mxu0 %v2572
      %v2972 = vpop.f32.mrf.mxu0
      %v2973 = vadd.f32 %v2257, %v2972
      %2974 = vmatmul.f32.gmra.mxu0 %v2575
      %v2975 = vpop.f32.mrf.mxu0
      %v2976 = vadd.f32 %v2257, %v2975
      %2977 = vmatmul.f32.gmra.mxu0 %v2578
      %v2978 = vpop.f32.mrf.mxu0
      %v2979 = vadd.f32 %v2257, %v2978
      %2980 = vmatmul.f32.gmra.mxu0 %v2581
      %v2981 = vpop.f32.mrf.mxu0
      %v2982 = vadd.f32 %v2257, %v2981
      %2983 = vmatmul.f32.gmra.mxu0 %v2584
      %v2984 = vpop.f32.mrf.mxu0
      %v2985 = vadd.f32 %v2257, %v2984
      %2986 = vmatmul.f32.gmra.mxu0 %v2587
      %v2987 = vpop.f32.mrf.mxu0
      %v2988 = vadd.f32 %v2257, %v2987
      %2989 = vmatmul.f32.gmra.mxu0 %v2590
      %v2990 = vpop.f32.mrf.mxu0
      %v2991 = vadd.f32 %v2257, %v2990
      %2992 = vmatmul.f32.gmra.mxu0 %v2593
      %v2993 = vpop.f32.mrf.mxu0
      %v2994 = vadd.f32 %v2257, %v2993
      %2995 = vmatmul.f32.gmra.mxu0 %v2596
      %v2996 = vpop.f32.mrf.mxu0
      %v2997 = vadd.f32 %v2257, %v2996
      %2998 = vmatmul.f32.gmra.mxu0 %v2599
      %v2999 = vpop.f32.mrf.mxu0
      %v3000 = vadd.f32 %v2257, %v2999
      %3001 = vmatmul.f32.gmra.mxu0 %v2602
      %v3002 = vpop.f32.mrf.mxu0
      %v3003 = vadd.f32 %v2257, %v3002
      %3004 = vmatmul.f32.gmra.mxu0 %v2605
      %v3005 = vpop.f32.mrf.mxu0
      %v3006 = vadd.f32 %v2257, %v3005
      %3007 = vmatmul.f32.gmra.mxu0 %v2608
      %v3008 = vpop.f32.mrf.mxu0
      %v3009 = vadd.f32 %v2257, %v3008
      %3010 = vmatmul.f32.gmra.mxu0 %v2611
      %v3011 = vpop.f32.mrf.mxu0
      %v3012 = vadd.f32 %v2257, %v3011
      %3013 = vmatmul.f32.gmra.mxu0 %v2614
      %v3014 = vpop.f32.mrf.mxu0
      %v3015 = vadd.f32 %v2257, %v3014
      %3016 = vmatmul.f32.gmra.mxu0 %v2617
      %v3017 = vpop.f32.mrf.mxu0
      %v3018 = vadd.f32 %v2257, %v3017
      %3019 = vmatmul.f32.gmra.mxu0 %v2620
      %v3020 = vpop.f32.mrf.mxu0
      %v3021 = vadd.f32 %v2257, %v3020
      %3022 = vmatmul.f32.gmra.mxu0 %v2623
      %v3023 = vpop.f32.mrf.mxu0
      %v3024 = vadd.f32 %v2257, %v3023
      %3025 = vmatmul.f32.gmra.mxu0 %v2626
      %v3026 = vpop.f32.mrf.mxu0
      %v3027 = vadd.f32 %v2257, %v3026
      %3028 = vmatmul.f32.gmra.mxu0 %v2629
      %v3029 = vpop.f32.mrf.mxu0
      %v3030 = vadd.f32 %v2257, %v3029
      %3031 = vmatmul.f32.gmra.mxu0 %v2632
      %v3032 = vpop.f32.mrf.mxu0
      %v3033 = vadd.f32 %v2257, %v3032
      %3034 = vmatmul.f32.gmra.mxu0 %v2635
      %v3035 = vpop.f32.mrf.mxu0
      %v3036 = vadd.f32 %v2257, %v3035
      %3037 = vmatmul.f32.gmra.mxu0 %v2638
      %v3038 = vpop.f32.mrf.mxu0
      %v3039 = vadd.f32 %v2257, %v3038
      %3040 = vmatmul.f32.gmra.mxu0 %v2641
      %v3041 = vpop.f32.mrf.mxu0
      %v3042 = vadd.f32 %v2257, %v3041
      %3043 = vdwg.mxu0
      %vm3044 = vcmask 31744
      %3045 = vst.msk [vmem:[%s280] sm:$0xff] %vm3044, %v2661
      %3046 = vst.msk [vmem:[%s280 + $0x8] sm:$0xff] %vm3044, %v2664
      %3047 = vst.msk [vmem:[%s280 + $0x10] sm:$0xff] %vm3044, %v2667
      %3048 = vst.msk [vmem:[%s280 + $0x18] sm:$0xff] %vm3044, %v2670
      %3049 = vst.msk [vmem:[%s280 + $0x20] sm:$0xff] %vm3044, %v2673
      %3050 = vst.msk [vmem:[%s280 + $0x28] sm:$0xff] %vm3044, %v2676
      %3051 = vst.msk [vmem:[%s280 + $0x30] sm:$0xff] %vm3044, %v2679
      %3052 = vst.msk [vmem:[%s280 + $0x38] sm:$0xff] %vm3044, %v2682
      %3053 = vst.msk [vmem:[%s280 + $0x40] sm:$0xff] %vm3044, %v2685
      %3054 = vst.msk [vmem:[%s280 + $0x48] sm:$0xff] %vm3044, %v2688
      %3055 = vst.msk [vmem:[%s280 + $0x50] sm:$0xff] %vm3044, %v2691
      %3056 = vst.msk [vmem:[%s280 + $0x58] sm:$0xff] %vm3044, %v2694
      %3057 = vst.msk [vmem:[%s280 + $0x60] sm:$0xff] %vm3044, %v2697
      %3058 = vst.msk [vmem:[%s280 + $0x68] sm:$0xff] %vm3044, %v2700
      %3059 = vst.msk [vmem:[%s280 + $0x70] sm:$0xff] %vm3044, %v2703
      %3060 = vst.msk [vmem:[%s280 + $0x78] sm:$0xff] %vm3044, %v2706
      %3061 = vst.msk [vmem:[%s280 + $0x80] sm:$0xff] %vm3044, %v2709
      %3062 = vst.msk [vmem:[%s280 + $0x88] sm:$0xff] %vm3044, %v2712
      %3063 = vst.msk [vmem:[%s280 + $0x90] sm:$0xff] %vm3044, %v2715
      %3064 = vst.msk [vmem:[%s280 + $0x98] sm:$0xff] %vm3044, %v2718
      %3065 = vst.msk [vmem:[%s280 + $0xa0] sm:$0xff] %vm3044, %v2721
      %3066 = vst.msk [vmem:[%s280 + $0xa8] sm:$0xff] %vm3044, %v2724
      %3067 = vst.msk [vmem:[%s280 + $0xb0] sm:$0xff] %vm3044, %v2727
      %3068 = vst.msk [vmem:[%s280 + $0xb8] sm:$0xff] %vm3044, %v2730
      %3069 = vst.msk [vmem:[%s280 + $0xc0] sm:$0xff] %vm3044, %v2733
      %3070 = vst.msk [vmem:[%s280 + $0xc8] sm:$0xff] %vm3044, %v2736
      %3071 = vst.msk [vmem:[%s280 + $0xd0] sm:$0xff] %vm3044, %v2739
      %3072 = vst.msk [vmem:[%s280 + $0xd8] sm:$0xff] %vm3044, %v2742
      %3073 = vst.msk [vmem:[%s280 + $0xe0] sm:$0xff] %vm3044, %v2745
      %3074 = vst.msk [vmem:[%s280 + $0xe8] sm:$0xff] %vm3044, %v2748
      %3075 = vst.msk [vmem:[%s280 + $0xf0] sm:$0xff] %vm3044, %v2751
      %3076 = vst.msk [vmem:[%s280 + $0xf8] sm:$0xff] %vm3044, %v2754
      %3077 = vst.msk [vmem:[%s280 + $0x100] sm:$0xff] %vm3044, %v2757
      %3078 = vst.msk [vmem:[%s280 + $0x108] sm:$0xff] %vm3044, %v2760
      %3079 = vst.msk [vmem:[%s280 + $0x110] sm:$0xff] %vm3044, %v2763
      %3080 = vst.msk [vmem:[%s280 + $0x118] sm:$0xff] %vm3044, %v2766
      %3081 = vst.msk [vmem:[%s280 + $0x120] sm:$0xff] %vm3044, %v2769
      %3082 = vst.msk [vmem:[%s280 + $0x128] sm:$0xff] %vm3044, %v2772
      %3083 = vst.msk [vmem:[%s280 + $0x130] sm:$0xff] %vm3044, %v2775
      %3084 = vst.msk [vmem:[%s280 + $0x138] sm:$0xff] %vm3044, %v2778
      %3085 = vst.msk [vmem:[%s280 + $0x140] sm:$0xff] %vm3044, %v2781
      %3086 = vst.msk [vmem:[%s280 + $0x148] sm:$0xff] %vm3044, %v2784
      %3087 = vst.msk [vmem:[%s280 + $0x150] sm:$0xff] %vm3044, %v2787
      %3088 = vst.msk [vmem:[%s280 + $0x158] sm:$0xff] %vm3044, %v2790
      %3089 = vst.msk [vmem:[%s280 + $0x160] sm:$0xff] %vm3044, %v2793
      %3090 = vst.msk [vmem:[%s280 + $0x168] sm:$0xff] %vm3044, %v2796
      %3091 = vst.msk [vmem:[%s280 + $0x170] sm:$0xff] %vm3044, %v2799
      %3092 = vst.msk [vmem:[%s280 + $0x178] sm:$0xff] %vm3044, %v2802
      %3093 = vst.msk [vmem:[%s280 + $0x180] sm:$0xff] %vm3044, %v2805
      %3094 = vst.msk [vmem:[%s280 + $0x188] sm:$0xff] %vm3044, %v2808
      %3095 = vst.msk [vmem:[%s280 + $0x190] sm:$0xff] %vm3044, %v2811
      %3096 = vst.msk [vmem:[%s280 + $0x198] sm:$0xff] %vm3044, %v2814
      %3097 = vst.msk [vmem:[%s280 + $0x1a0] sm:$0xff] %vm3044, %v2817
      %3098 = vst.msk [vmem:[%s280 + $0x1a8] sm:$0xff] %vm3044, %v2820
      %3099 = vst.msk [vmem:[%s280 + $0x1b0] sm:$0xff] %vm3044, %v2823
      %3100 = vst.msk [vmem:[%s280 + $0x1b8] sm:$0xff] %vm3044, %v2826
      %3101 = vst.msk [vmem:[%s280 + $0x1c0] sm:$0xff] %vm3044, %v2829
      %3102 = vst.msk [vmem:[%s280 + $0x1c8] sm:$0xff] %vm3044, %v2832
      %3103 = vst.msk [vmem:[%s280 + $0x1d0] sm:$0xff] %vm3044, %v2835
      %3104 = vst.msk [vmem:[%s280 + $0x1d8] sm:$0xff] %vm3044, %v2838
      %3105 = vst.msk [vmem:[%s280 + $0x1e0] sm:$0xff] %vm3044, %v2841
      %3106 = vst.msk [vmem:[%s280 + $0x1e8] sm:$0xff] %vm3044, %v2844
      %3107 = vst.msk [vmem:[%s280 + $0x1f0] sm:$0xff] %vm3044, %v2847
      %3108 = vst.msk [vmem:[%s280 + $0x1f8] sm:$0xff] %vm3044, %v2850
      %3109 = vst.msk [vmem:[%s280 + $0x200] sm:$0xff] %vm3044, %v2853
      %3110 = vst.msk [vmem:[%s280 + $0x208] sm:$0xff] %vm3044, %v2856
      %3111 = vst.msk [vmem:[%s280 + $0x210] sm:$0xff] %vm3044, %v2859
      %3112 = vst.msk [vmem:[%s280 + $0x218] sm:$0xff] %vm3044, %v2862
      %3113 = vst.msk [vmem:[%s280 + $0x220] sm:$0xff] %vm3044, %v2865
      %3114 = vst.msk [vmem:[%s280 + $0x228] sm:$0xff] %vm3044, %v2868
      %3115 = vst.msk [vmem:[%s280 + $0x230] sm:$0xff] %vm3044, %v2871
      %3116 = vst.msk [vmem:[%s280 + $0x238] sm:$0xff] %vm3044, %v2874
      %3117 = vst.msk [vmem:[%s280 + $0x240] sm:$0xff] %vm3044, %v2877
      %3118 = vst.msk [vmem:[%s280 + $0x248] sm:$0xff] %vm3044, %v2880
      %3119 = vst.msk [vmem:[%s280 + $0x250] sm:$0xff] %vm3044, %v2883
      %3120 = vst.msk [vmem:[%s280 + $0x258] sm:$0xff] %vm3044, %v2886
      %3121 = vst.msk [vmem:[%s280 + $0x260] sm:$0xff] %vm3044, %v2889
      %3122 = vst.msk [vmem:[%s280 + $0x268] sm:$0xff] %vm3044, %v2892
      %3123 = vst.msk [vmem:[%s280 + $0x270] sm:$0xff] %vm3044, %v2895
      %3124 = vst.msk [vmem:[%s280 + $0x278] sm:$0xff] %vm3044, %v2898
      %3125 = vst.msk [vmem:[%s280 + $0x280] sm:$0xff] %vm3044, %v2901
      %3126 = vst.msk [vmem:[%s280 + $0x288] sm:$0xff] %vm3044, %v2904
      %3127 = vst.msk [vmem:[%s280 + $0x290] sm:$0xff] %vm3044, %v2907
      %3128 = vst.msk [vmem:[%s280 + $0x298] sm:$0xff] %vm3044, %v2910
      %3129 = vst.msk [vmem:[%s280 + $0x2a0] sm:$0xff] %vm3044, %v2913
      %3130 = vst.msk [vmem:[%s280 + $0x2a8] sm:$0xff] %vm3044, %v2916
      %3131 = vst.msk [vmem:[%s280 + $0x2b0] sm:$0xff] %vm3044, %v2919
      %3132 = vst.msk [vmem:[%s280 + $0x2b8] sm:$0xff] %vm3044, %v2922
      %3133 = vst.msk [vmem:[%s280 + $0x2c0] sm:$0xff] %vm3044, %v2925
      %3134 = vst.msk [vmem:[%s280 + $0x2c8] sm:$0xff] %vm3044, %v2928
      %3135 = vst.msk [vmem:[%s280 + $0x2d0] sm:$0xff] %vm3044, %v2931
      %3136 = vst.msk [vmem:[%s280 + $0x2d8] sm:$0xff] %vm3044, %v2934
      %3137 = vst.msk [vmem:[%s280 + $0x2e0] sm:$0xff] %vm3044, %v2937
      %3138 = vst.msk [vmem:[%s280 + $0x2e8] sm:$0xff] %vm3044, %v2940
      %3139 = vst.msk [vmem:[%s280 + $0x2f0] sm:$0xff] %vm3044, %v2943
      %3140 = vst.msk [vmem:[%s280 + $0x2f8] sm:$0xff] %vm3044, %v2946
      %3141 = vst.msk [vmem:[%s280 + $0x300] sm:$0xff] %vm3044, %v2949
      %3142 = vst.msk [vmem:[%s280 + $0x308] sm:$0xff] %vm3044, %v2952
      %3143 = vst.msk [vmem:[%s280 + $0x310] sm:$0xff] %vm3044, %v2955
      %3144 = vst.msk [vmem:[%s280 + $0x318] sm:$0xff] %vm3044, %v2958
      %3145 = vst.msk [vmem:[%s280 + $0x320] sm:$0xff] %vm3044, %v2961
      %3146 = vst.msk [vmem:[%s280 + $0x328] sm:$0xff] %vm3044, %v2964
      %3147 = vst.msk [vmem:[%s280 + $0x330] sm:$0xff] %vm3044, %v2967
      %3148 = vst.msk [vmem:[%s280 + $0x338] sm:$0xff] %vm3044, %v2970
      %3149 = vst.msk [vmem:[%s280 + $0x340] sm:$0xff] %vm3044, %v2973
      %3150 = vst.msk [vmem:[%s280 + $0x348] sm:$0xff] %vm3044, %v2976
      %3151 = vst.msk [vmem:[%s280 + $0x350] sm:$0xff] %vm3044, %v2979
      %3152 = vst.msk [vmem:[%s280 + $0x358] sm:$0xff] %vm3044, %v2982
      %3153 = vst.msk [vmem:[%s280 + $0x360] sm:$0xff] %vm3044, %v2985
      %3154 = vst.msk [vmem:[%s280 + $0x368] sm:$0xff] %vm3044, %v2988
      %3155 = vst.msk [vmem:[%s280 + $0x370] sm:$0xff] %vm3044, %v2991
      %3156 = vst.msk [vmem:[%s280 + $0x378] sm:$0xff] %vm3044, %v2994
      %3157 = vst.msk [vmem:[%s280 + $0x380] sm:$0xff] %vm3044, %v2997
      %3158 = vst.msk [vmem:[%s280 + $0x388] sm:$0xff] %vm3044, %v3000
      %3159 = vst.msk [vmem:[%s280 + $0x390] sm:$0xff] %vm3044, %v3003
      %3160 = vst.msk [vmem:[%s280 + $0x398] sm:$0xff] %vm3044, %v3006
      %3161 = vst.msk [vmem:[%s280 + $0x3a0] sm:$0xff] %vm3044, %v3009
      %3162 = vst.msk [vmem:[%s280 + $0x3a8] sm:$0xff] %vm3044, %v3012
      %3163 = vst.msk [vmem:[%s280 + $0x3b0] sm:$0xff] %vm3044, %v3015
      %3164 = vst.msk [vmem:[%s280 + $0x3b8] sm:$0xff] %vm3044, %v3018
      %3165 = vst.msk [vmem:[%s280 + $0x3c0] sm:$0xff] %vm3044, %v3021
      %3166 = vst.msk [vmem:[%s280 + $0x3c8] sm:$0xff] %vm3044, %v3024
      %3167 = vst.msk [vmem:[%s280 + $0x3d0] sm:$0xff] %vm3044, %v3027
      %3168 = vst.msk [vmem:[%s280 + $0x3d8] sm:$0xff] %vm3044, %v3030
      %3169 = vst.msk [vmem:[%s280 + $0x3e0] sm:$0xff] %vm3044, %v3033
      %3170 = vst.msk [vmem:[%s280 + $0x3e8] sm:$0xff] %vm3044, %v3036
      %3171 = vst.msk [vmem:[%s280 + $0x3f0] sm:$0xff] %vm3044, %v3039
      %3172 = vst.msk [vmem:[%s280 + $0x3f8] sm:$0xff] %vm3044, %v3042
      %s3173 = smul.u32 128, %s18
      %p3174 = scmp.lt.s32.totalorder %s3173, 511
      %s3175 = scalar_select %p3174, %s3173, 511
      %s3176 = smul.addr %s3175, 8
      %s3177 = scalar_lea.vmem %s7, %s3176
      // Predicated region
      $region49: #{tpu_custom_call.1} parent=47 // pred_check
        %p3178 = pneg %p188
      $region50: #{tpu_custom_call.1} parent=47 // pred_check_branch
        %3180 = sbr.rel (%p3178) target = $region52
      $region51: #{tpu_custom_call.1} parent=47 // pred_region
        %s3181 = smul.u32 128, %s18
      $region52: #{tpu_custom_call.1} parent=47 // pred_fallthru
        _
    $region48: #{tpu_custom_call.1} parent=5 // pred_fallthru
      _
    %p3182 = scmp.le.s32.totalorder 2, %s13
    // Predicated region
    $region53: #{tpu_custom_call.1} parent=5 // pred_check
      %p3183 = pneg %p3182
    $region54: #{tpu_custom_call.1} parent=5 // pred_check_branch
      %3185 = sbr.rel (%p3183) target = $region56
    $region55: #{tpu_custom_call.1} parent=5 // pred_region
      %s3186 = ssub.s32 %s13, 2
      // Predicated region
      $region57: #{tpu_custom_call.1} parent=55 // pred_check
        %p3187 = pneg %p194
      $region58: #{tpu_custom_call.1} parent=55 // pred_check_branch
        %3189 = sbr.rel (%p3187) target = $region60
      $region59: #{tpu_custom_call.1} parent=55 // pred_region
        %s3190 = smul.u32 128, %s19
        %p3191 = scmp.lt.s32.totalorder %s3190, 511
        %s3192 = scalar_select %p3191, %s3190, 511
        %s3193 = smul.addr %s3192, 8
        %s3194 = scalar_lea.vmem %s7, %s3193
      $region60: #{tpu_custom_call.1} parent=55 // pred_fallthru
        _
    $region56: #{tpu_custom_call.1} parent=5 // pred_fallthru
      _
  $region6: #{tpu_custom_call.1} parent=0 // loop_footer
    %s17 = sadd.s32 1, %s13
  $region7: #{tpu_custom_call.1} parent=0 // loop_footer_branch
    %12 = sbr.rel target = $region3
  $region8: #{tpu_custom_call.1} parent=0 // loop_exit
    _

</llo_original>
